<compile_context>
chip_gen: v5e
topology: v5e:2x2
jax: 0.10.0
libtpu: 0.0.40
codegen_flags: <defaults>
</compile_context>

<pallas_src>
import functools

import jax
import jax.numpy as jnp
from jax import lax
from jax.experimental import pallas as pl
from jax.experimental.pallas import tpu as pltpu

EPS = 1e-5                    # nn.BatchNorm2d default eps
LANE = 128                    # pad K and Cout to multiples of the lane width
TILE_M = 512                  # im2col rows per grid step (multiple of 16)
VMEM_LIMIT = 64 * 1024 * 1024


def _round_up(x, m):
    return (x + m - 1) // m * m


def _pad2(a, rows, cols):
    r, c = a.shape
    return jnp.pad(a, ((0, rows - r), (0, cols - c)))


# ----------------------------- Pallas kernels ------------------------------

def _conv_stats_kernel(p_ref, w_ref, y_ref, sum_ref, sq_ref):
    """Pass 1 (fused): y = P @ W (f32 acc on the MXU), store y once as bf16,
    and accumulate per-channel sum / sum-of-squares of the *stored* values so
    pass 2's normalization is self-consistent with what it reads back."""
    @pl.when(pl.program_id(0) == 0)
    def _():
        sum_ref[...] = jnp.zeros_like(sum_ref)
        sq_ref[...] = jnp.zeros_like(sq_ref)

    y = jnp.dot(p_ref[...], w_ref[...], preferred_element_type=jnp.float32)
    yb = y.astype(jnp.bfloat16)
    y_ref[...] = yb
    yf = yb.astype(jnp.float32)
    sum_ref[...] += jnp.sum(yf, axis=0, keepdims=True)
    sq_ref[...] += jnp.sum(yf * yf, axis=0, keepdims=True)


def _bn_apply_kernel(y_ref, scale_ref, shift_ref, o_ref, *, relu):
    """Pass 2: pure elementwise normalize + affine (+ ReLU), f32 math."""
    out = y_ref[...].astype(jnp.float32) * scale_ref[...] + shift_ref[...]
    if relu:
        out = jnp.maximum(out, 0.0)
    o_ref[...] = out.astype(o_ref.dtype)


def _bn_apply_add_relu_kernel(y_ref, scale_ref, shift_ref, r_ref, o_ref):
    """Pass 2 (skip branch): normalize + affine + residual add + ReLU."""
    out = (y_ref[...].astype(jnp.float32) * scale_ref[...] + shift_ref[...]
           + r_ref[...].astype(jnp.float32))
    o_ref[...] = jnp.maximum(out, 0.0).astype(o_ref.dtype)


# ----------------------------- pallas_call glue -----------------------------

def _conv_stats_call(p, w, tile_m):
    mp, kp = p.shape
    cp = w.shape[1]
    return pl.pallas_call(
        _conv_stats_kernel,
        out_shape=(jax.ShapeDtypeStruct((mp, cp), jnp.bfloat16),
                   jax.ShapeDtypeStruct((1, cp), jnp.float32),
                   jax.ShapeDtypeStruct((1, cp), jnp.float32)),
        grid=(mp // tile_m,),
        in_specs=[pl.BlockSpec((tile_m, kp), lambda i: (i, 0)),
                  # TODO(synk): pipeline_mode=pl.Buffered(1) on this constant
                  # weight tile would reclaim kp*cp*2 bytes of VMEM on v7x.
                  pl.BlockSpec((kp, cp), lambda i: (0, 0))],
        out_specs=(pl.BlockSpec((tile_m, cp), lambda i: (i, 0)),
                   pl.BlockSpec((1, cp), lambda i: (0, 0)),
                   pl.BlockSpec((1, cp), lambda i: (0, 0))),
        # Resident stats accumulator => reduction axis must be "arbitrary".
        # TODO(synk): per-core partial sums would let this axis run on both
        # v7x TensorCores.
        compiler_params=pltpu.CompilerParams(
            dimension_semantics=("arbitrary",),
            vmem_limit_bytes=VMEM_LIMIT),
    )(p, w)


def _bn_apply_call(y, scale, shift, tile_m, relu, out_dtype):
    mp, cp = y.shape
    return pl.pallas_call(
        functools.partial(_bn_apply_kernel, relu=relu),
        out_shape=jax.ShapeDtypeStruct((mp, cp), out_dtype),
        grid=(mp // tile_m,),
        in_specs=[pl.BlockSpec((tile_m, cp), lambda i: (i, 0)),
                  pl.BlockSpec((1, cp), lambda i: (0, 0)),
                  pl.BlockSpec((1, cp), lambda i: (0, 0))],
        out_specs=pl.BlockSpec((tile_m, cp), lambda i: (i, 0)),
        compiler_params=pltpu.CompilerParams(
            dimension_semantics=("parallel",),
            vmem_limit_bytes=VMEM_LIMIT),
    )(y, scale, shift)


def _bn_apply_add_relu_call(y, scale, shift, r, tile_m, out_dtype):
    mp, cp = y.shape
    return pl.pallas_call(
        _bn_apply_add_relu_kernel,
        out_shape=jax.ShapeDtypeStruct((mp, cp), out_dtype),
        grid=(mp // tile_m,),
        in_specs=[pl.BlockSpec((tile_m, cp), lambda i: (i, 0)),
                  pl.BlockSpec((1, cp), lambda i: (0, 0)),
                  pl.BlockSpec((1, cp), lambda i: (0, 0)),
                  pl.BlockSpec((tile_m, cp), lambda i: (i, 0))],
        out_specs=pl.BlockSpec((tile_m, cp), lambda i: (i, 0)),
        compiler_params=pltpu.CompilerParams(
            dimension_semantics=("parallel",),
            vmem_limit_bytes=VMEM_LIMIT),
    )(y, scale, shift, r)


# ------------------------------ JAX glue code -------------------------------

def im2col(x_nhwc, stride):
    """3x3 / pad=1 patch extraction -> (N*Ho*Wo, 9*C), tap order (dy, dx, c)."""
    n, h, w, c = x_nhwc.shape
    xp = jnp.pad(x_nhwc, ((0, 0), (1, 1), (1, 1), (0, 0)))
    ho = (h + 2 - 3) // stride + 1
    wo = (w + 2 - 3) // stride + 1
    cols = []
    for dy in range(3):
        for dx in range(3):
            cols.append(
                lax.slice(xp,
                          (0, dy, dx, 0),
                          (n, dy + (ho - 1) * stride + 1,
                           dx + (wo - 1) * stride + 1, c),
                          (1, stride, stride, 1)))
    pat = jnp.stack(cols, axis=3)                     # (n, ho, wo, 9, c)
    return pat.reshape(n * ho * wo, 9 * c), (ho, wo)


def conv_bn(x, w, gamma, beta, *, stride=1, residual=None, relu=True,
            out_dtype=jnp.float32):
    """conv3x3(pad=1, stride) + BN(batch stats) [+ residual add] [+ ReLU].

    x: (N,H,W,Cin) NHWC; w: (3,3,Cin,Cout) HWIO. Returns NHWC `out_dtype`.
    """
    n, h, wd, cin = x.shape
    cout = w.shape[-1]

    # TODO(synk): replace the XLA-side im2col with an in-kernel 3x3 direct
    # conv over a VMEM-resident (rows+halo, W+2, Cin) band — removes the ~9x
    # inflated patch stream and the K=9*Cin -> 128 padding waste at small Cin
    # (and would let conv1+conv2 of a stage fuse into one pallas_call).
    patches, (ho, wo) = im2col(x.astype(jnp.bfloat16), stride)
    m = n * ho * wo
    k = 9 * cin

    kp = _round_up(k, LANE)                   # lane-dense contraction dim
    cp = _round_up(cout, LANE)                # lane-dense output channels
    tile_m = min(TILE_M, _round_up(m, 16))    # 16: bf16 sublane-pack friendly
    mp = _round_up(m, tile_m)

    p_pad = _pad2(patches, mp, kp)                                     # bf16
    w_pad = _pad2(w.reshape(k, cout).astype(jnp.bfloat16), kp, cp)     # bf16

    # Pass 1 (fused): y = P @ W written once (bf16) + per-channel sum/sumsq.
    # Zero-padded rows contribute nothing; divide by the true M below.
    y, s, ss = _conv_stats_call(p_pad, w_pad, tile_m)

    # Tiny (1, Cp) XLA epilogue: fold batch stats + affine into scale/shift.
    inv_m = 1.0 / float(m)
    mean = s * inv_m
    var = jnp.maximum(ss * inv_m - mean * mean, 0.0)   # E[y^2] - E[y]^2
    g_pad = _pad2(gamma.reshape(1, cout).astype(jnp.float32), 1, cp)
    b_pad = _pad2(beta.reshape(1, cout).astype(jnp.float32), 1, cp)
    scale = g_pad * lax.rsqrt(var + EPS)
    shift = b_pad - mean * scale

    # Pass 2: pure elementwise normalize+affine (+ residual)(+ ReLU).
    if residual is not None:
        assert residual.shape == (n, ho, wo, cout)
        r_pad = _pad2(residual.reshape(m, cout).astype(jnp.float32), mp, cp)
        out = _bn_apply_add_relu_call(y, scale, shift, r_pad, tile_m,
                                      out_dtype)
    else:
        out = _bn_apply_call(y, scale, shift, tile_m, relu, out_dtype)
    return out[:m, :cout].reshape(n, ho, wo, cout)


def residual_block_forward(x_nchw, params, out_filters, downsample):
    x = jnp.transpose(x_nchw, (0, 2, 3, 1)).astype(jnp.float32)  # NCHW -> NHWC

    # residual_block: (N-1) x [conv-bn-relu -> conv-bn] with skip add + relu.
    # h1 is emitted bf16 (its only consumer is the next conv, fed bf16);
    # block outputs / residual path stay f32.
    for (w1, g1, b1, w2, g2, b2) in params["residual"]:
        res = x
        h1 = conv_bn(x, w1, g1, b1, stride=1, relu=True,
                     out_dtype=jnp.bfloat16)
        x = conv_bn(h1, w2, g2, b2, stride=1, residual=res)

    # final_block
    wf1, gf1, bf1, wf2, gf2, bf2 = params["final"]
    res = x
    h1 = conv_bn(x, wf1, gf1, bf1, stride=1, relu=True,
                 out_dtype=jnp.bfloat16)
    stride = 2 if downsample else 1
    if downsample:
        pc = out_filters // 4            # pad_identity: ::2 subsample + C pad
        res = jnp.pad(res[:, ::2, ::2, :], ((0, 0), (0, 0), (0, 0), (pc, pc)))
    x = conv_bn(h1, wf2, gf2, bf2, stride=stride, residual=res)
    return jnp.transpose(x, (0, 3, 1, 2))                        # NHWC -> NCHW


# --------------------------- pure-JAX reference -----------------------------
# The reference casts conv operands to bf16 with f32 accumulation to mirror
# the kernel's MXU input precision; all BN / residual math stays f32.

def _ref_conv(x, w, stride):
    return lax.conv_general_dilated(
        x.astype(jnp.bfloat16), w.astype(jnp.bfloat16),
        (stride, stride), ((1, 1), (1, 1)),
        dimension_numbers=("NHWC", "HWIO", "NHWC"),
        preferred_element_type=jnp.float32)


def _ref_bn(y, g, b):
    mean = jnp.mean(y, axis=(0, 1, 2), keepdims=True)
    var = jnp.mean(jnp.square(y - mean), axis=(0, 1, 2), keepdims=True)
    return ((y - mean) * lax.rsqrt(var + EPS) * g.reshape(1, 1, 1, -1)
            + b.reshape(1, 1, 1, -1))


def ref_forward(x_nchw, params, out_filters, downsample):
    x = jnp.transpose(x_nchw, (0, 2, 3, 1)).astype(jnp.float32)
    for (w1, g1, b1, w2, g2, b2) in params["residual"]:
        res = x
        h1 = jax.nn.relu(_ref_bn(_ref_conv(x, w1, 1), g1, b1))
        x = jax.nn.relu(_ref_bn(_ref_conv(h1, w2, 1), g2, b2) + res)
    wf1, gf1, bf1, wf2, gf2, bf2 = params["final"]
    res = x
    h1 = jax.nn.relu(_ref_bn(_ref_conv(x, wf1, 1), gf1, bf1))
    stride = 2 if downsample else 1
    y = _ref_bn(_ref_conv(h1, wf2, stride), gf2, bf2)
    if downsample:
        pc = out_filters // 4
        r = jnp.pad(res[:, ::2, ::2, :], ((0, 0), (0, 0), (0, 0), (pc, pc)))
    else:
        r = res
    return jnp.transpose(jax.nn.relu(y + r), (0, 3, 1, 2))


# --------------------------------- main --------------------------------------

def _kaiming(key, cin, cout):
    # kaiming_normal_ default: gain=sqrt(2), fan_in = cin*3*3
    std = (2.0 / (cin * 9)) ** 0.5
    return std * jax.random.normal(key, (3, 3, cin, cout), jnp.float32)


if __name__ == "__main__":
    in_filters, out_filters, N_blocks, downsample = 4, 8, 2, True
    B, H, W = 2, 16, 16

    key = jax.random.PRNGKey(0)
    keys = jax.random.split(key, 2 * (N_blocks - 1) + 2 + 1)

    def bn_params(c):
        return (jnp.ones((c,), jnp.float32), jnp.zeros((c,), jnp.float32))

    residual_params = []
    ki = 0
    for _ in range(N_blocks - 1):
        w1 = _kaiming(keys[ki], in_filters, in_filters); ki += 1
        w2 = _kaiming(keys[ki], in_filters, in_filters); ki += 1
        g1, b1 = bn_params(in_filters)
        g2, b2 = bn_params(in_filters)
        residual_params.append((w1, g1, b1, w2, g2, b2))

    wf1 = _kaiming(keys[ki], in_filters, in_filters); ki += 1
    wf2 = _kaiming(keys[ki], in_filters, out_filters); ki += 1
    gf1, bf1 = bn_params(in_filters)
    gf2, bf2 = bn_params(out_filters)
    params = {"residual": residual_params,
              "final": (wf1, gf1, bf1, wf2, gf2, bf2)}

    x = jax.random.normal(keys[ki], (B, in_filters, H, W), jnp.float32)

    fwd = jax.jit(residual_block_forward, static_argnums=(2, 3))
    out = jax.block_until_ready(fwd(x, params, out_filters, downsample))

    ref = jax.block_until_ready(
        ref_forward(x, params, out_filters, downsample))

    assert out.shape == (B, out_filters, H // 2, W // 2), out.shape
    assert jnp.allclose(out, ref, atol=3e-2, rtol=3e-2), float(
        jnp.max(jnp.abs(out - ref)))
    print("KERNEL_OK")
</pallas_src>

<mosaic_0001>
module attributes {stable_mosaic.version = 11 : i64} {
  func.func @_conv_stats_kernel(%arg0: i32, %arg1: memref<512x128xbf16, #tpu.memory_space<vmem>>, %arg2: memref<128x128xbf16, #tpu.memory_space<vmem>>, %arg3: memref<512x128xbf16, #tpu.memory_space<vmem>>, %arg4: memref<1x128xf32, #tpu.memory_space<vmem>>, %arg5: memref<1x128xf32, #tpu.memory_space<vmem>>) attributes {dimension_semantics = [#tpu.dimension_semantics<arbitrary>], iteration_bounds = array<i64: 1>, scalar_prefetch = 0 : i64, scratch_operands = 0 : i64, tpu.core_type = #tpu.core_type<tc>, window_params = [{transform_indices = @transform_0, window_bounds = array<i64: 512, 128>}, {pipeline_mode = #tpu.pipeline_mode<synchronous>, transform_indices = @transform_1, window_bounds = array<i64: 128, 128>}, {transform_indices = @transform_2, window_bounds = array<i64: 512, 128>}, {pipeline_mode = #tpu.pipeline_mode<synchronous>, transform_indices = @transform_3, window_bounds = array<i64: 1, 128>}, {pipeline_mode = #tpu.pipeline_mode<synchronous>, transform_indices = @transform_4, window_bounds = array<i64: 1, 128>}]} {
    %c0_i32 = arith.constant 0 : i32
    %0 = arith.cmpi eq, %arg0, %c0_i32 : i32
    %1 = arith.extui %0 : i1 to i32
    %c0_i32_0 = arith.constant 0 : i32
    %2 = arith.cmpi ne, %1, %c0_i32_0 : i32
    scf.if %2 {
      %cst_16 = arith.constant 0.000000e+00 : f32
      %20 = vector.broadcast %cst_16 : f32 to vector<1x128xf32>
      %c0_17 = arith.constant 0 : index
      %c0_18 = arith.constant 0 : index
      %21 = vector.load %arg4[%c0_17, %c0_18] : memref<1x128xf32, #tpu.memory_space<vmem>>, vector<1x128xf32>
      tpu.vector_store %arg4[%c0_17, %c0_18], %20 {strides = array<i32>} : memref<1x128xf32, #tpu.memory_space<vmem>>, vector<1x128xf32>,
      %cst_19 = arith.constant 0.000000e+00 : f32
      %22 = vector.broadcast %cst_19 : f32 to vector<1x128xf32>
      %c0_20 = arith.constant 0 : index
      %c0_21 = arith.constant 0 : index
      %23 = vector.load %arg5[%c0_20, %c0_21] : memref<1x128xf32, #tpu.memory_space<vmem>>, vector<1x128xf32>
      tpu.vector_store %arg5[%c0_20, %c0_21], %22 {strides = array<i32>} : memref<1x128xf32, #tpu.memory_space<vmem>>, vector<1x128xf32>,
    } else {
    }
    %c0 = arith.constant 0 : index
    %c0_1 = arith.constant 0 : index
    %3 = vector.load %arg1[%c0, %c0_1] : memref<512x128xbf16, #tpu.memory_space<vmem>>, vector<512x128xbf16>
    %c0_2 = arith.constant 0 : index
    %c0_3 = arith.constant 0 : index
    %4 = vector.load %arg2[%c0_2, %c0_3] : memref<128x128xbf16, #tpu.memory_space<vmem>>, vector<128x128xbf16>
    %cst = arith.constant dense<0.000000e+00> : vector<512x128xf32>
    %5 = tpu.matmul %3, %4, %cst {dimension_numbers = #tpu.dot_dimension_numbers<[1], [0], [0], [1], [0, 0, 1, 1], [], []>} : vector<512x128xbf16>, vector<128x128xbf16>, vector<512x128xf32> -> vector<512x128xf32>
    %6 = arith.truncf %5 : vector<512x128xf32> to vector<512x128xbf16>
    %c0_4 = arith.constant 0 : index
    %c0_5 = arith.constant 0 : index
    %7 = vector.load %arg3[%c0_4, %c0_5] : memref<512x128xbf16, #tpu.memory_space<vmem>>, vector<512x128xbf16>
    tpu.vector_store %arg3[%c0_4, %c0_5], %6 {strides = array<i32>} : memref<512x128xbf16, #tpu.memory_space<vmem>>, vector<512x128xbf16>,
    %8 = arith.extf %6 : vector<512x128xbf16> to vector<512x128xf32>
    %c0_6 = arith.constant 0 : index
    %c0_7 = arith.constant 0 : index
    %9 = vector.load %arg4[%c0_6, %c0_7] : memref<1x128xf32, #tpu.memory_space<vmem>>, vector<1x128xf32>
    %cst_8 = arith.constant dense<0.000000e+00> : vector<128xf32>
    %10 = vector.multi_reduction <add>, %8, %cst_8 [0] : vector<512x128xf32> to vector<128xf32>
    %11 = vector.shape_cast %10 : vector<128xf32> to vector<1x128xf32>
    %12 = arith.addf %9, %11 : vector<1x128xf32>
    %c0_9 = arith.constant 0 : index
    %c0_10 = arith.constant 0 : index
    %13 = vector.load %arg4[%c0_9, %c0_10] : memref<1x128xf32, #tpu.memory_space<vmem>>, vector<1x128xf32>
    tpu.vector_store %arg4[%c0_9, %c0_10], %12 {strides = array<i32>} : memref<1x128xf32, #tpu.memory_space<vmem>>, vector<1x128xf32>,
    %c0_11 = arith.constant 0 : index
    %c0_12 = arith.constant 0 : index
    %14 = vector.load %arg5[%c0_11, %c0_12] : memref<1x128xf32, #tpu.memory_space<vmem>>, vector<1x128xf32>
    %15 = arith.mulf %8, %8 : vector<512x128xf32>
    %cst_13 = arith.constant dense<0.000000e+00> : vector<128xf32>
    %16 = vector.multi_reduction <add>, %15, %cst_13 [0] : vector<512x128xf32> to vector<128xf32>
    %17 = vector.shape_cast %16 : vector<128xf32> to vector<1x128xf32>
    %18 = arith.addf %14, %17 : vector<1x128xf32>
    %c0_14 = arith.constant 0 : index
    %c0_15 = arith.constant 0 : index
    %19 = vector.load %arg5[%c0_14, %c0_15] : memref<1x128xf32, #tpu.memory_space<vmem>>, vector<1x128xf32>
    tpu.vector_store %arg5[%c0_14, %c0_15], %18 {strides = array<i32>} : memref<1x128xf32, #tpu.memory_space<vmem>>, vector<1x128xf32>,
    return
  }
  func.func @transform_0(%arg0: i32) -> (i32, i32) {
    %c0_i32 = arith.constant 0 : i32
    %c0_i32_0 = arith.constant 0 : i32
    return %arg0, %c0_i32 : i32, i32
  }
  func.func @transform_1(%arg0: i32) -> (i32, i32) {
    %c0_i32 = arith.constant 0 : i32
    %c0_i32_0 = arith.constant 0 : i32
    %c0_i32_1 = arith.constant 0 : i32
    return %c0_i32, %c0_i32_0 : i32, i32
  }
  func.func @transform_2(%arg0: i32) -> (i32, i32) {
    %c0_i32 = arith.constant 0 : i32
    %c0_i32_0 = arith.constant 0 : i32
    return %arg0, %c0_i32 : i32, i32
  }
  func.func @transform_3(%arg0: i32) -> (i32, i32) {
    %c0_i32 = arith.constant 0 : i32
    %c0_i32_0 = arith.constant 0 : i32
    %c0_i32_1 = arith.constant 0 : i32
    return %c0_i32, %c0_i32_0 : i32, i32
  }
  func.func @transform_4(%arg0: i32) -> (i32, i32) {
    %c0_i32 = arith.constant 0 : i32
    %c0_i32_0 = arith.constant 0 : i32
    %c0_i32_1 = arith.constant 0 : i32
    return %c0_i32, %c0_i32_0 : i32, i32
  }
}

module attributes {stable_mosaic.version = 11 : i64} {
  func.func @_bn_apply_kernel(%arg0: i32, %arg1: memref<512x128xbf16, #tpu.memory_space<vmem>>, %arg2: memref<1x128xf32, #tpu.memory_space<vmem>>, %arg3: memref<1x128xf32, #tpu.memory_space<vmem>>, %arg4: memref<512x128xbf16, #tpu.memory_space<vmem>>) attributes {dimension_semantics = [#tpu.dimension_semantics<parallel>], iteration_bounds = array<i64: 1>, scalar_prefetch = 0 : i64, scratch_operands = 0 : i64, tpu.core_type = #tpu.core_type<tc>, window_params = [{transform_indices = @transform_0, window_bounds = array<i64: 512, 128>}, {pipeline_mode = #tpu.pipeline_mode<synchronous>, transform_indices = @transform_1, window_bounds = array<i64: 1, 128>}, {pipeline_mode = #tpu.pipeline_mode<synchronous>, transform_indices = @transform_2, window_bounds = array<i64: 1, 128>}, {transform_indices = @transform_3, window_bounds = array<i64: 512, 128>}]} {
    %c0 = arith.constant 0 : index
    %c0_0 = arith.constant 0 : index
    %0 = vector.load %arg1[%c0, %c0_0] : memref<512x128xbf16, #tpu.memory_space<vmem>>, vector<512x128xbf16>
    %1 = arith.extf %0 : vector<512x128xbf16> to vector<512x128xf32>
    %c0_1 = arith.constant 0 : index
    %c0_2 = arith.constant 0 : index
    %2 = vector.load %arg2[%c0_1, %c0_2] : memref<1x128xf32, #tpu.memory_space<vmem>>, vector<1x128xf32>
    %3 = vector.broadcast %2 : vector<1x128xf32> to vector<512x128xf32>
    %4 = arith.mulf %1, %3 : vector<512x128xf32>
    %c0_3 = arith.constant 0 : index
    %c0_4 = arith.constant 0 : index
    %5 = vector.load %arg3[%c0_3, %c0_4] : memref<1x128xf32, #tpu.memory_space<vmem>>, vector<1x128xf32>
    %6 = vector.broadcast %5 : vector<1x128xf32> to vector<512x128xf32>
    %7 = arith.addf %4, %6 : vector<512x128xf32>
    %cst = arith.constant 0.000000e+00 : f32
    %8 = vector.broadcast %cst : f32 to vector<512x128xf32>
    %9 = arith.maximumf %7, %8 : vector<512x128xf32>
    %10 = arith.truncf %9 : vector<512x128xf32> to vector<512x128xbf16>
    %c0_5 = arith.constant 0 : index
    %c0_6 = arith.constant 0 : index
    %11 = vector.load %arg4[%c0_5, %c0_6] : memref<512x128xbf16, #tpu.memory_space<vmem>>, vector<512x128xbf16>
    tpu.vector_store %arg4[%c0_5, %c0_6], %10 {strides = array<i32>} : memref<512x128xbf16, #tpu.memory_space<vmem>>, vector<512x128xbf16>,
    return
  }
  func.func @transform_0(%arg0: i32) -> (i32, i32) {
    %c0_i32 = arith.constant 0 : i32
    %c0_i32_0 = arith.constant 0 : i32
    return %arg0, %c0_i32 : i32, i32
  }
  func.func @transform_1(%arg0: i32) -> (i32, i32) {
    %c0_i32 = arith.constant 0 : i32
    %c0_i32_0 = arith.constant 0 : i32
    %c0_i32_1 = arith.constant 0 : i32
    return %c0_i32, %c0_i32_0 : i32, i32
  }
  func.func @transform_2(%arg0: i32) -> (i32, i32) {
    %c0_i32 = arith.constant 0 : i32
    %c0_i32_0 = arith.constant 0 : i32
    %c0_i32_1 = arith.constant 0 : i32
    return %c0_i32, %c0_i32_0 : i32, i32
  }
  func.func @transform_3(%arg0: i32) -> (i32, i32) {
    %c0_i32 = arith.constant 0 : i32
    %c0_i32_0 = arith.constant 0 : i32
    return %arg0, %c0_i32 : i32, i32
  }
}

module attributes {stable_mosaic.version = 11 : i64} {
  func.func @_bn_apply_add_relu_kernel(%arg0: i32, %arg1: memref<512x128xbf16, #tpu.memory_space<vmem>>, %arg2: memref<1x128xf32, #tpu.memory_space<vmem>>, %arg3: memref<1x128xf32, #tpu.memory_space<vmem>>, %arg4: memref<512x128xf32, #tpu.memory_space<vmem>>, %arg5: memref<512x128xf32, #tpu.memory_space<vmem>>) attributes {dimension_semantics = [#tpu.dimension_semantics<parallel>], iteration_bounds = array<i64: 1>, scalar_prefetch = 0 : i64, scratch_operands = 0 : i64, tpu.core_type = #tpu.core_type<tc>, window_params = [{transform_indices = @transform_0, window_bounds = array<i64: 512, 128>}, {pipeline_mode = #tpu.pipeline_mode<synchronous>, transform_indices = @transform_1, window_bounds = array<i64: 1, 128>}, {pipeline_mode = #tpu.pipeline_mode<synchronous>, transform_indices = @transform_2, window_bounds = array<i64: 1, 128>}, {transform_indices = @transform_3, window_bounds = array<i64: 512, 128>}, {transform_indices = @transform_4, window_bounds = array<i64: 512, 128>}]} {
    %c0 = arith.constant 0 : index
    %c0_0 = arith.constant 0 : index
    %0 = vector.load %arg1[%c0, %c0_0] : memref<512x128xbf16, #tpu.memory_space<vmem>>, vector<512x128xbf16>
    %1 = arith.extf %0 : vector<512x128xbf16> to vector<512x128xf32>
    %c0_1 = arith.constant 0 : index
    %c0_2 = arith.constant 0 : index
    %2 = vector.load %arg2[%c0_1, %c0_2] : memref<1x128xf32, #tpu.memory_space<vmem>>, vector<1x128xf32>
    %3 = vector.broadcast %2 : vector<1x128xf32> to vector<512x128xf32>
    %4 = arith.mulf %1, %3 : vector<512x128xf32>
    %c0_3 = arith.constant 0 : index
    %c0_4 = arith.constant 0 : index
    %5 = vector.load %arg3[%c0_3, %c0_4] : memref<1x128xf32, #tpu.memory_space<vmem>>, vector<1x128xf32>
    %6 = vector.broadcast %5 : vector<1x128xf32> to vector<512x128xf32>
    %7 = arith.addf %4, %6 : vector<512x128xf32>
    %c0_5 = arith.constant 0 : index
    %c0_6 = arith.constant 0 : index
    %8 = vector.load %arg4[%c0_5, %c0_6] : memref<512x128xf32, #tpu.memory_space<vmem>>, vector<512x128xf32>
    %9 = arith.addf %7, %8 : vector<512x128xf32>
    %cst = arith.constant 0.000000e+00 : f32
    %10 = vector.broadcast %cst : f32 to vector<512x128xf32>
    %11 = arith.maximumf %9, %10 : vector<512x128xf32>
    %c0_7 = arith.constant 0 : index
    %c0_8 = arith.constant 0 : index
    %12 = vector.load %arg5[%c0_7, %c0_8] : memref<512x128xf32, #tpu.memory_space<vmem>>, vector<512x128xf32>
    tpu.vector_store %arg5[%c0_7, %c0_8], %11 {strides = array<i32>} : memref<512x128xf32, #tpu.memory_space<vmem>>, vector<512x128xf32>,
    return
  }
  func.func @transform_0(%arg0: i32) -> (i32, i32) {
    %c0_i32 = arith.constant 0 : i32
    %c0_i32_0 = arith.constant 0 : i32
    return %arg0, %c0_i32 : i32, i32
  }
  func.func @transform_1(%arg0: i32) -> (i32, i32) {
    %c0_i32 = arith.constant 0 : i32
    %c0_i32_0 = arith.constant 0 : i32
    %c0_i32_1 = arith.constant 0 : i32
    return %c0_i32, %c0_i32_0 : i32, i32
  }
  func.func @transform_2(%arg0: i32) -> (i32, i32) {
    %c0_i32 = arith.constant 0 : i32
    %c0_i32_0 = arith.constant 0 : i32
    %c0_i32_1 = arith.constant 0 : i32
    return %c0_i32, %c0_i32_0 : i32, i32
  }
  func.func @transform_3(%arg0: i32) -> (i32, i32) {
    %c0_i32 = arith.constant 0 : i32
    %c0_i32_0 = arith.constant 0 : i32
    return %arg0, %c0_i32 : i32, i32
  }
  func.func @transform_4(%arg0: i32) -> (i32, i32) {
    %c0_i32 = arith.constant 0 : i32
    %c0_i32_0 = arith.constant 0 : i32
    return %arg0, %c0_i32 : i32, i32
  }
}

module attributes {stable_mosaic.version = 11 : i64} {
  func.func @_conv_stats_kernel(%arg0: i32, %arg1: memref<128x128xbf16, #tpu.memory_space<vmem>>, %arg2: memref<128x128xbf16, #tpu.memory_space<vmem>>, %arg3: memref<128x128xbf16, #tpu.memory_space<vmem>>, %arg4: memref<1x128xf32, #tpu.memory_space<vmem>>, %arg5: memref<1x128xf32, #tpu.memory_space<vmem>>) attributes {dimension_semantics = [#tpu.dimension_semantics<arbitrary>], iteration_bounds = array<i64: 1>, scalar_prefetch = 0 : i64, scratch_operands = 0 : i64, tpu.core_type = #tpu.core_type<tc>, window_params = [{transform_indices = @transform_0, window_bounds = array<i64: 128, 128>}, {pipeline_mode = #tpu.pipeline_mode<synchronous>, transform_indices = @transform_1, window_bounds = array<i64: 128, 128>}, {transform_indices = @transform_2, window_bounds = array<i64: 128, 128>}, {pipeline_mode = #tpu.pipeline_mode<synchronous>, transform_indices = @transform_3, window_bounds = array<i64: 1, 128>}, {pipeline_mode = #tpu.pipeline_mode<synchronous>, transform_indices = @transform_4, window_bounds = array<i64: 1, 128>}]} {
    %c0_i32 = arith.constant 0 : i32
    %0 = arith.cmpi eq, %arg0, %c0_i32 : i32
    %1 = arith.extui %0 : i1 to i32
    %c0_i32_0 = arith.constant 0 : i32
    %2 = arith.cmpi ne, %1, %c0_i32_0 : i32
    scf.if %2 {
      %cst_16 = arith.constant 0.000000e+00 : f32
      %20 = vector.broadcast %cst_16 : f32 to vector<1x128xf32>
      %c0_17 = arith.constant 0 : index
      %c0_18 = arith.constant 0 : index
      %21 = vector.load %arg4[%c0_17, %c0_18] : memref<1x128xf32, #tpu.memory_space<vmem>>, vector<1x128xf32>
      tpu.vector_store %arg4[%c0_17, %c0_18], %20 {strides = array<i32>} : memref<1x128xf32, #tpu.memory_space<vmem>>, vector<1x128xf32>,
      %cst_19 = arith.constant 0.000000e+00 : f32
      %22 = vector.broadcast %cst_19 : f32 to vector<1x128xf32>
      %c0_20 = arith.constant 0 : index
      %c0_21 = arith.constant 0 : index
      %23 = vector.load %arg5[%c0_20, %c0_21] : memref<1x128xf32, #tpu.memory_space<vmem>>, vector<1x128xf32>
      tpu.vector_store %arg5[%c0_20, %c0_21], %22 {strides = array<i32>} : memref<1x128xf32, #tpu.memory_space<vmem>>, vector<1x128xf32>,
    } else {
    }
    %c0 = arith.constant 0 : index
    %c0_1 = arith.constant 0 : index
    %3 = vector.load %arg1[%c0, %c0_1] : memref<128x128xbf16, #tpu.memory_space<vmem>>, vector<128x128xbf16>
    %c0_2 = arith.constant 0 : index
    %c0_3 = arith.constant 0 : index
    %4 = vector.load %arg2[%c0_2, %c0_3] : memref<128x128xbf16, #tpu.memory_space<vmem>>, vector<128x128xbf16>
    %cst = arith.constant dense<0.000000e+00> : vector<128x128xf32>
    %5 = tpu.matmul %3, %4, %cst {dimension_numbers = #tpu.dot_dimension_numbers<[1], [0], [0], [1], [0, 0, 1, 1], [], []>} : vector<128x128xbf16>, vector<128x128xbf16>, vector<128x128xf32> -> vector<128x128xf32>
    %6 = arith.truncf %5 : vector<128x128xf32> to vector<128x128xbf16>
    %c0_4 = arith.constant 0 : index
    %c0_5 = arith.constant 0 : index
    %7 = vector.load %arg3[%c0_4, %c0_5] : memref<128x128xbf16, #tpu.memory_space<vmem>>, vector<128x128xbf16>
    tpu.vector_store %arg3[%c0_4, %c0_5], %6 {strides = array<i32>} : memref<128x128xbf16, #tpu.memory_space<vmem>>, vector<128x128xbf16>,
    %8 = arith.extf %6 : vector<128x128xbf16> to vector<128x128xf32>
    %c0_6 = arith.constant 0 : index
    %c0_7 = arith.constant 0 : index
    %9 = vector.load %arg4[%c0_6, %c0_7] : memref<1x128xf32, #tpu.memory_space<vmem>>, vector<1x128xf32>
    %cst_8 = arith.constant dense<0.000000e+00> : vector<128xf32>
    %10 = vector.multi_reduction <add>, %8, %cst_8 [0] : vector<128x128xf32> to vector<128xf32>
    %11 = vector.shape_cast %10 : vector<128xf32> to vector<1x128xf32>
    %12 = arith.addf %9, %11 : vector<1x128xf32>
    %c0_9 = arith.constant 0 : index
    %c0_10 = arith.constant 0 : index
    %13 = vector.load %arg4[%c0_9, %c0_10] : memref<1x128xf32, #tpu.memory_space<vmem>>, vector<1x128xf32>
    tpu.vector_store %arg4[%c0_9, %c0_10], %12 {strides = array<i32>} : memref<1x128xf32, #tpu.memory_space<vmem>>, vector<1x128xf32>,
    %c0_11 = arith.constant 0 : index
    %c0_12 = arith.constant 0 : index
    %14 = vector.load %arg5[%c0_11, %c0_12] : memref<1x128xf32, #tpu.memory_space<vmem>>, vector<1x128xf32>
    %15 = arith.mulf %8, %8 : vector<128x128xf32>
    %cst_13 = arith.constant dense<0.000000e+00> : vector<128xf32>
    %16 = vector.multi_reduction <add>, %15, %cst_13 [0] : vector<128x128xf32> to vector<128xf32>
    %17 = vector.shape_cast %16 : vector<128xf32> to vector<1x128xf32>
    %18 = arith.addf %14, %17 : vector<1x128xf32>
    %c0_14 = arith.constant 0 : index
    %c0_15 = arith.constant 0 : index
    %19 = vector.load %arg5[%c0_14, %c0_15] : memref<1x128xf32, #tpu.memory_space<vmem>>, vector<1x128xf32>
    tpu.vector_store %arg5[%c0_14, %c0_15], %18 {strides = array<i32>} : memref<1x128xf32, #tpu.memory_space<vmem>>, vector<1x128xf32>,
    return
  }
  func.func @transform_0(%arg0: i32) -> (i32, i32) {
    %c0_i32 = arith.constant 0 : i32
    %c0_i32_0 = arith.constant 0 : i32
    return %arg0, %c0_i32 : i32, i32
  }
  func.func @transform_1(%arg0: i32) -> (i32, i32) {
    %c0_i32 = arith.constant 0 : i32
    %c0_i32_0 = arith.constant 0 : i32
    %c0_i32_1 = arith.constant 0 : i32
    return %c0_i32, %c0_i32_0 : i32, i32
  }
  func.func @transform_2(%arg0: i32) -> (i32, i32) {
    %c0_i32 = arith.constant 0 : i32
    %c0_i32_0 = arith.constant 0 : i32
    return %arg0, %c0_i32 : i32, i32
  }
  func.func @transform_3(%arg0: i32) -> (i32, i32) {
    %c0_i32 = arith.constant 0 : i32
    %c0_i32_0 = arith.constant 0 : i32
    %c0_i32_1 = arith.constant 0 : i32
    return %c0_i32, %c0_i32_0 : i32, i32
  }
  func.func @transform_4(%arg0: i32) -> (i32, i32) {
    %c0_i32 = arith.constant 0 : i32
    %c0_i32_0 = arith.constant 0 : i32
    %c0_i32_1 = arith.constant 0 : i32
    return %c0_i32, %c0_i32_0 : i32, i32
  }
}

module attributes {stable_mosaic.version = 11 : i64} {
  func.func @_bn_apply_add_relu_kernel(%arg0: i32, %arg1: memref<128x128xbf16, #tpu.memory_space<vmem>>, %arg2: memref<1x128xf32, #tpu.memory_space<vmem>>, %arg3: memref<1x128xf32, #tpu.memory_space<vmem>>, %arg4: memref<128x128xf32, #tpu.memory_space<vmem>>, %arg5: memref<128x128xf32, #tpu.memory_space<vmem>>) attributes {dimension_semantics = [#tpu.dimension_semantics<parallel>], iteration_bounds = array<i64: 1>, scalar_prefetch = 0 : i64, scratch_operands = 0 : i64, tpu.core_type = #tpu.core_type<tc>, window_params = [{transform_indices = @transform_0, window_bounds = array<i64: 128, 128>}, {pipeline_mode = #tpu.pipeline_mode<synchronous>, transform_indices = @transform_1, window_bounds = array<i64: 1, 128>}, {pipeline_mode = #tpu.pipeline_mode<synchronous>, transform_indices = @transform_2, window_bounds = array<i64: 1, 128>}, {transform_indices = @transform_3, window_bounds = array<i64: 128, 128>}, {transform_indices = @transform_4, window_bounds = array<i64: 128, 128>}]} {
    %c0 = arith.constant 0 : index
    %c0_0 = arith.constant 0 : index
    %0 = vector.load %arg1[%c0, %c0_0] : memref<128x128xbf16, #tpu.memory_space<vmem>>, vector<128x128xbf16>
    %1 = arith.extf %0 : vector<128x128xbf16> to vector<128x128xf32>
    %c0_1 = arith.constant 0 : index
    %c0_2 = arith.constant 0 : index
    %2 = vector.load %arg2[%c0_1, %c0_2] : memref<1x128xf32, #tpu.memory_space<vmem>>, vector<1x128xf32>
    %3 = vector.broadcast %2 : vector<1x128xf32> to vector<128x128xf32>
    %4 = arith.mulf %1, %3 : vector<128x128xf32>
    %c0_3 = arith.constant 0 : index
    %c0_4 = arith.constant 0 : index
    %5 = vector.load %arg3[%c0_3, %c0_4] : memref<1x128xf32, #tpu.memory_space<vmem>>, vector<1x128xf32>
    %6 = vector.broadcast %5 : vector<1x128xf32> to vector<128x128xf32>
    %7 = arith.addf %4, %6 : vector<128x128xf32>
    %c0_5 = arith.constant 0 : index
    %c0_6 = arith.constant 0 : index
    %8 = vector.load %arg4[%c0_5, %c0_6] : memref<128x128xf32, #tpu.memory_space<vmem>>, vector<128x128xf32>
    %9 = arith.addf %7, %8 : vector<128x128xf32>
    %cst = arith.constant 0.000000e+00 : f32
    %10 = vector.broadcast %cst : f32 to vector<128x128xf32>
    %11 = arith.maximumf %9, %10 : vector<128x128xf32>
    %c0_7 = arith.constant 0 : index
    %c0_8 = arith.constant 0 : index
    %12 = vector.load %arg5[%c0_7, %c0_8] : memref<128x128xf32, #tpu.memory_space<vmem>>, vector<128x128xf32>
    tpu.vector_store %arg5[%c0_7, %c0_8], %11 {strides = array<i32>} : memref<128x128xf32, #tpu.memory_space<vmem>>, vector<128x128xf32>,
    return
  }
  func.func @transform_0(%arg0: i32) -> (i32, i32) {
    %c0_i32 = arith.constant 0 : i32
    %c0_i32_0 = arith.constant 0 : i32
    return %arg0, %c0_i32 : i32, i32
  }
  func.func @transform_1(%arg0: i32) -> (i32, i32) {
    %c0_i32 = arith.constant 0 : i32
    %c0_i32_0 = arith.constant 0 : i32
    %c0_i32_1 = arith.constant 0 : i32
    return %c0_i32, %c0_i32_0 : i32, i32
  }
  func.func @transform_2(%arg0: i32) -> (i32, i32) {
    %c0_i32 = arith.constant 0 : i32
    %c0_i32_0 = arith.constant 0 : i32
    %c0_i32_1 = arith.constant 0 : i32
    return %c0_i32, %c0_i32_0 : i32, i32
  }
  func.func @transform_3(%arg0: i32) -> (i32, i32) {
    %c0_i32 = arith.constant 0 : i32
    %c0_i32_0 = arith.constant 0 : i32
    return %arg0, %c0_i32 : i32, i32
  }
  func.func @transform_4(%arg0: i32) -> (i32, i32) {
    %c0_i32 = arith.constant 0 : i32
    %c0_i32_0 = arith.constant 0 : i32
    return %arg0, %c0_i32 : i32, i32
  }
}

</mosaic_0001>

<llo_original>
// kernel: residual_block_forward.9
$region0: #{residual_block_forward.9}
  #allocation0 [shape = 'u32[]', space=smem, size = 0x4, offset = 0x4, fixed_abs, tag = 'smem constant byte address 0x4 - core index']
  #allocation1 [shape = 'u32[72,128]{1,0:T(1,128)}', space=vmem, size = 0x9000, scoped, tag = 'internal scratch']
  %s0 = inlined_call_operand.vmem [shape: bf16[512,128], index: 0, kind: input, shape index: {}]
  %s1 = inlined_call_operand.vmem [shape: f32[1,128], index: 1, kind: input, shape index: {}]
  %s2 = inlined_call_operand.vmem [shape: f32[1,128], index: 2, kind: input, shape index: {}]
  %s3 = inlined_call_operand.vmem [shape: bf16[512,128], index: 3, kind: output, shape index: {}]
  %s4 = sld [smem:[#allocation0]]
  $region22: #{residual_block_forward.9} parent=0
    _
  %s6 = ssub.s32 1, %s4
  %s7 = scalar_select 0, %s6, %s4
  // Predicated region
  $region2: #{residual_block_forward.9} parent=0 // pred_check
    _
  $region3: #{residual_block_forward.9} parent=0 // pred_check_branch
    %9 = sbr.rel (0) target = $region5
  $region4: #{residual_block_forward.9} parent=0 // pred_region
    _
  $region5: #{residual_block_forward.9} parent=0 // pred_fallthru
    _
  // Predicated region
  $region6: #{residual_block_forward.9} parent=0 // pred_check
    _
  $region7: #{residual_block_forward.9} parent=0 // pred_check_branch
    %11 = sbr.rel (0) target = $region9
  $region8: #{residual_block_forward.9} parent=0 // pred_region
    _
  $region9: #{residual_block_forward.9} parent=0 // pred_fallthru
    _
  // Predicated region
  $region10: #{residual_block_forward.9} parent=0 // pred_check
    _
  $region11: #{residual_block_forward.9} parent=0 // pred_check_branch
    %13 = sbr.rel (0) target = $region13
  $region12: #{residual_block_forward.9} parent=0 // pred_region
    _
  $region13: #{residual_block_forward.9} parent=0 // pred_fallthru
    _
  %v14 = vld [vmem:[%s0] sm:$0xf]
  %v15 = vld [vmem:[%s0 + $0x4] sm:$0xf]
  %v16 = vld [vmem:[%s0 + $0x8] sm:$0xf]
  %v17 = vld [vmem:[%s0 + $0xc] sm:$0xf]
  %v18 = vld [vmem:[%s0 + $0x10] sm:$0xf]
  %v19 = vld [vmem:[%s0 + $0x14] sm:$0xf]
  %v20 = vld [vmem:[%s0 + $0x18] sm:$0xf]
  %v21 = vld [vmem:[%s0 + $0x1c] sm:$0xf]
  %v22 = vld [vmem:[%s0 + $0x20] sm:$0xf]
  %v23 = vld [vmem:[%s0 + $0x24] sm:$0xf]
  %v24 = vld [vmem:[%s0 + $0x28] sm:$0xf]
  %v25 = vld [vmem:[%s0 + $0x2c] sm:$0xf]
  %v26 = vld [vmem:[%s0 + $0x30] sm:$0xf]
  %v27 = vld [vmem:[%s0 + $0x34] sm:$0xf]
  %v28 = vld [vmem:[%s0 + $0x38] sm:$0xf]
  %v29 = vld [vmem:[%s0 + $0x3c] sm:$0xf]
  %v30 = vld [vmem:[%s0 + $0x40] sm:$0xf]
  %v31 = vld [vmem:[%s0 + $0x44] sm:$0xf]
  %v32 = vld [vmem:[%s0 + $0x48] sm:$0xf]
  %v33 = vld [vmem:[%s0 + $0x4c] sm:$0xf]
  %v34 = vld [vmem:[%s0 + $0x50] sm:$0xf]
  %v35 = vld [vmem:[%s0 + $0x54] sm:$0xf]
  %v36 = vld [vmem:[%s0 + $0x58] sm:$0xf]
  %v37 = vld [vmem:[%s0 + $0x5c] sm:$0xf]
  %v38 = vld [vmem:[%s0 + $0x60] sm:$0xf]
  %v39 = vld [vmem:[%s0 + $0x64] sm:$0xf]
  %v40 = vld [vmem:[%s0 + $0x68] sm:$0xf]
  %v41 = vld [vmem:[%s0 + $0x6c] sm:$0xf]
  %v42 = vld [vmem:[%s0 + $0x70] sm:$0xf]
  %v43 = vld [vmem:[%s0 + $0x74] sm:$0xf]
  %v44 = vld [vmem:[%s0 + $0x78] sm:$0xf]
  %v45 = vld [vmem:[%s0 + $0x7c] sm:$0xf]
  %v46 = vld [vmem:[%s0 + $0x80] sm:$0xf]
  %v47 = vld [vmem:[%s0 + $0x84] sm:$0xf]
  %v48 = vld [vmem:[%s0 + $0x88] sm:$0xf]
  %v49 = vld [vmem:[%s0 + $0x8c] sm:$0xf]
  %v50 = vld [vmem:[%s0 + $0x90] sm:$0xf]
  %v51 = vld [vmem:[%s0 + $0x94] sm:$0xf]
  %v52 = vld [vmem:[%s0 + $0x98] sm:$0xf]
  %v53 = vld [vmem:[%s0 + $0x9c] sm:$0xf]
  %v54 = vld [vmem:[%s0 + $0xa0] sm:$0xf]
  %v55 = vld [vmem:[%s0 + $0xa4] sm:$0xf]
  %v56 = vld [vmem:[%s0 + $0xa8] sm:$0xf]
  %v57 = vld [vmem:[%s0 + $0xac] sm:$0xf]
  %v58 = vld [vmem:[%s0 + $0xb0] sm:$0xf]
  %v59 = vld [vmem:[%s0 + $0xb4] sm:$0xf]
  %v60 = vld [vmem:[%s0 + $0xb8] sm:$0xf]
  %v61 = vld [vmem:[%s0 + $0xbc] sm:$0xf]
  %v62 = vld [vmem:[%s0 + $0xc0] sm:$0xf]
  %v63 = vld [vmem:[%s0 + $0xc4] sm:$0xf]
  %v64 = vld [vmem:[%s0 + $0xc8] sm:$0xf]
  %v65 = vld [vmem:[%s0 + $0xcc] sm:$0xf]
  %v66 = vld [vmem:[%s0 + $0xd0] sm:$0xf]
  %v67 = vld [vmem:[%s0 + $0xd4] sm:$0xf]
  %v68 = vld [vmem:[%s0 + $0xd8] sm:$0xf]
  %v69 = vld [vmem:[%s0 + $0xdc] sm:$0xf]
  %v70 = vld [vmem:[%s0 + $0xe0] sm:$0xf]
  %v71 = vld [vmem:[%s0 + $0xe4] sm:$0xf]
  %v72 = vld [vmem:[%s0 + $0xe8] sm:$0xf]
  %v73 = vld [vmem:[%s0 + $0xec] sm:$0xf]
  %v74 = vld [vmem:[%s0 + $0xf0] sm:$0xf]
  %v75 = vld [vmem:[%s0 + $0xf4] sm:$0xf]
  %v76 = vld [vmem:[%s0 + $0xf8] sm:$0xf]
  %v77 = vld [vmem:[%s0 + $0xfc] sm:$0xf]
  %v78 = vunpack.c.l.bf16 %v14
  %v79 = vunpack.c.l.bf16 %v15
  %v80 = vunpack.c.l.bf16 %v16
  %v81 = vunpack.c.l.bf16 %v17
  %v82 = vunpack.c.l.bf16 %v18
  %v83 = vunpack.c.l.bf16 %v19
  %v84 = vunpack.c.l.bf16 %v20
  %v85 = vunpack.c.l.bf16 %v21
  %v86 = vunpack.c.l.bf16 %v22
  %v87 = vunpack.c.l.bf16 %v23
  %v88 = vunpack.c.l.bf16 %v24
  %v89 = vunpack.c.l.bf16 %v25
  %v90 = vunpack.c.l.bf16 %v26
  %v91 = vunpack.c.l.bf16 %v27
  %v92 = vunpack.c.l.bf16 %v28
  %v93 = vunpack.c.l.bf16 %v29
  %v94 = vunpack.c.l.bf16 %v30
  %v95 = vunpack.c.l.bf16 %v31
  %v96 = vunpack.c.l.bf16 %v32
  %v97 = vunpack.c.l.bf16 %v33
  %v98 = vunpack.c.l.bf16 %v34
  %v99 = vunpack.c.l.bf16 %v35
  %v100 = vunpack.c.l.bf16 %v36
  %v101 = vunpack.c.l.bf16 %v37
  %v102 = vunpack.c.l.bf16 %v38
  %v103 = vunpack.c.l.bf16 %v39
  %v104 = vunpack.c.l.bf16 %v40
  %v105 = vunpack.c.l.bf16 %v41
  %v106 = vunpack.c.l.bf16 %v42
  %v107 = vunpack.c.l.bf16 %v43
  %v108 = vunpack.c.l.bf16 %v44
  %v109 = vunpack.c.l.bf16 %v45
  %v110 = vunpack.c.l.bf16 %v46
  %v111 = vunpack.c.l.bf16 %v47
  %v112 = vunpack.c.l.bf16 %v48
  %v113 = vunpack.c.l.bf16 %v49
  %v114 = vunpack.c.l.bf16 %v50
  %v115 = vunpack.c.l.bf16 %v51
  %v116 = vunpack.c.l.bf16 %v52
  %v117 = vunpack.c.l.bf16 %v53
  %v118 = vunpack.c.l.bf16 %v54
  %v119 = vunpack.c.l.bf16 %v55
  %v120 = vunpack.c.l.bf16 %v56
  %v121 = vunpack.c.l.bf16 %v57
  %v122 = vunpack.c.l.bf16 %v58
  %v123 = vunpack.c.l.bf16 %v59
  %v124 = vunpack.c.l.bf16 %v60
  %v125 = vunpack.c.l.bf16 %v61
  %v126 = vunpack.c.l.bf16 %v62
  %v127 = vunpack.c.l.bf16 %v63
  %v128 = vunpack.c.l.bf16 %v64
  %v129 = vunpack.c.l.bf16 %v65
  %v130 = vunpack.c.l.bf16 %v66
  %v131 = vunpack.c.l.bf16 %v67
  %v132 = vunpack.c.l.bf16 %v68
  %v133 = vunpack.c.l.bf16 %v69
  %v134 = vunpack.c.l.bf16 %v70
  %v135 = vunpack.c.l.bf16 %v71
  %v136 = vunpack.c.l.bf16 %v72
  %v137 = vunpack.c.l.bf16 %v73
  %v138 = vunpack.c.l.bf16 %v74
  %v139 = vunpack.c.l.bf16 %v75
  %v140 = vunpack.c.l.bf16 %v76
  %v141 = vunpack.c.l.bf16 %v77
  %v142 = vld [vmem:[%s1] sm:$0x1]
  %v144 = vperm.slane %v142, 0
  %v146 = vmul.f32 %v78, %v144
  %v147 = vmul.f32 %v79, %v144
  %v148 = vmul.f32 %v80, %v144
  %v149 = vmul.f32 %v81, %v144
  %v150 = vmul.f32 %v82, %v144
  %v151 = vmul.f32 %v83, %v144
  %v152 = vmul.f32 %v84, %v144
  %v153 = vmul.f32 %v85, %v144
  %v154 = vmul.f32 %v86, %v144
  %v155 = vmul.f32 %v87, %v144
  %v156 = vmul.f32 %v88, %v144
  %v157 = vmul.f32 %v89, %v144
  %v158 = vmul.f32 %v90, %v144
  %v159 = vmul.f32 %v91, %v144
  %v160 = vmul.f32 %v92, %v144
  %v161 = vmul.f32 %v93, %v144
  %v162 = vmul.f32 %v94, %v144
  %v163 = vmul.f32 %v95, %v144
  %v164 = vmul.f32 %v96, %v144
  %v165 = vmul.f32 %v97, %v144
  %v166 = vmul.f32 %v98, %v144
  %v167 = vmul.f32 %v99, %v144
  %v168 = vmul.f32 %v100, %v144
  %v169 = vmul.f32 %v101, %v144
  %v170 = vmul.f32 %v102, %v144
  %v171 = vmul.f32 %v103, %v144
  %v172 = vmul.f32 %v104, %v144
  %v173 = vmul.f32 %v105, %v144
  %v174 = vmul.f32 %v106, %v144
  %v175 = vmul.f32 %v107, %v144
  %v176 = vmul.f32 %v108, %v144
  %v177 = vmul.f32 %v109, %v144
  %v178 = vmul.f32 %v110, %v144
  %v179 = vmul.f32 %v111, %v144
  %v180 = vmul.f32 %v112, %v144
  %v181 = vmul.f32 %v113, %v144
  %v182 = vmul.f32 %v114, %v144
  %v183 = vmul.f32 %v115, %v144
  %v184 = vmul.f32 %v116, %v144
  %v185 = vmul.f32 %v117, %v144
  %v186 = vmul.f32 %v118, %v144
  %v187 = vmul.f32 %v119, %v144
  %v188 = vmul.f32 %v120, %v144
  %v189 = vmul.f32 %v121, %v144
  %v190 = vmul.f32 %v122, %v144
  %v191 = vmul.f32 %v123, %v144
  %v192 = vmul.f32 %v124, %v144
  %v193 = vmul.f32 %v125, %v144
  %v194 = vmul.f32 %v126, %v144
  %v195 = vmul.f32 %v127, %v144
  %v196 = vmul.f32 %v128, %v144
  %v197 = vmul.f32 %v129, %v144
  %v198 = vmul.f32 %v130, %v144
  %v199 = vmul.f32 %v131, %v144
  %v200 = vmul.f32 %v132, %v144
  %v201 = vmul.f32 %v133, %v144
  %v202 = vmul.f32 %v134, %v144
  %v203 = vmul.f32 %v135, %v144
  %v204 = vmul.f32 %v136, %v144
  %v205 = vmul.f32 %v137, %v144
  %v206 = vmul.f32 %v138, %v144
  %v207 = vmul.f32 %v139, %v144
  %v208 = vmul.f32 %v140, %v144
  %v209 = vmul.f32 %v141, %v144
  %v210 = vld [vmem:[%s2] sm:$0x1]
  %v212 = vperm.slane %v210, 0
  %v214 = vadd.f32 %v146, %v212
  %v215 = vadd.f32 %v147, %v212
  %v216 = vadd.f32 %v148, %v212
  %v217 = vadd.f32 %v149, %v212
  %v218 = vadd.f32 %v150, %v212
  %v219 = vadd.f32 %v151, %v212
  %v220 = vadd.f32 %v152, %v212
  %v221 = vadd.f32 %v153, %v212
  %v222 = vadd.f32 %v154, %v212
  %v223 = vadd.f32 %v155, %v212
  %v224 = vadd.f32 %v156, %v212
  %v225 = vadd.f32 %v157, %v212
  %v226 = vadd.f32 %v158, %v212
  %v227 = vadd.f32 %v159, %v212
  %v228 = vadd.f32 %v160, %v212
  %v229 = vadd.f32 %v161, %v212
  %v230 = vadd.f32 %v162, %v212
  %v231 = vadd.f32 %v163, %v212
  %v232 = vadd.f32 %v164, %v212
  %v233 = vadd.f32 %v165, %v212
  %v234 = vadd.f32 %v166, %v212
  %v235 = vadd.f32 %v167, %v212
  %v236 = vadd.f32 %v168, %v212
  %v237 = vadd.f32 %v169, %v212
  %v238 = vadd.f32 %v170, %v212
  %v239 = vadd.f32 %v171, %v212
  %v240 = vadd.f32 %v172, %v212
  %v241 = vadd.f32 %v173, %v212
  %v242 = vadd.f32 %v174, %v212
  %v243 = vadd.f32 %v175, %v212
  %v244 = vadd.f32 %v176, %v212
  %v245 = vadd.f32 %v177, %v212
  %v246 = vadd.f32 %v178, %v212
  %v247 = vadd.f32 %v179, %v212
  %v248 = vadd.f32 %v180, %v212
  %v249 = vadd.f32 %v181, %v212
  %v250 = vadd.f32 %v182, %v212
  %v251 = vadd.f32 %v183, %v212
  %v252 = vadd.f32 %v184, %v212
  %v253 = vadd.f32 %v185, %v212
  %v254 = vadd.f32 %v186, %v212
  %v255 = vadd.f32 %v187, %v212
  %v256 = vadd.f32 %v188, %v212
  %v257 = vadd.f32 %v189, %v212
  %v258 = vadd.f32 %v190, %v212
  %v259 = vadd.f32 %v191, %v212
  %v260 = vadd.f32 %v192, %v212
  %v261 = vadd.f32 %v193, %v212
  %v262 = vadd.f32 %v194, %v212
  %v263 = vadd.f32 %v195, %v212
  %v264 = vadd.f32 %v196, %v212
  %v265 = vadd.f32 %v197, %v212
  %v266 = vadd.f32 %v198, %v212
  %v267 = vadd.f32 %v199, %v212
  %v268 = vadd.f32 %v200, %v212
  %v269 = vadd.f32 %v201, %v212
  %v270 = vadd.f32 %v202, %v212
  %v271 = vadd.f32 %v203, %v212
  %v272 = vadd.f32 %v204, %v212
  %v273 = vadd.f32 %v205, %v212
  %v274 = vadd.f32 %v206, %v212
  %v275 = vadd.f32 %v207, %v212
  %v276 = vadd.f32 %v208, %v212
  %v277 = vadd.f32 %v209, %v212
  %v278 = vmax.f32 %v214, 0.0
  %v279 = vmax.f32 %v215, 0.0
  %v280 = vmax.f32 %v216, 0.0
  %v281 = vmax.f32 %v217, 0.0
  %v282 = vmax.f32 %v218, 0.0
  %v283 = vmax.f32 %v219, 0.0
  %v284 = vmax.f32 %v220, 0.0
  %v285 = vmax.f32 %v221, 0.0
  %v286 = vmax.f32 %v222, 0.0
  %v287 = vmax.f32 %v223, 0.0
  %v288 = vmax.f32 %v224, 0.0
  %v289 = vmax.f32 %v225, 0.0
  %v290 = vmax.f32 %v226, 0.0
  %v291 = vmax.f32 %v227, 0.0
  %v292 = vmax.f32 %v228, 0.0
  %v293 = vmax.f32 %v229, 0.0
  %v294 = vmax.f32 %v230, 0.0
  %v295 = vmax.f32 %v231, 0.0
  %v296 = vmax.f32 %v232, 0.0
  %v297 = vmax.f32 %v233, 0.0
  %v298 = vmax.f32 %v234, 0.0
  %v299 = vmax.f32 %v235, 0.0
  %v300 = vmax.f32 %v236, 0.0
  %v301 = vmax.f32 %v237, 0.0
  %v302 = vmax.f32 %v238, 0.0
  %v303 = vmax.f32 %v239, 0.0
  %v304 = vmax.f32 %v240, 0.0
  %v305 = vmax.f32 %v241, 0.0
  %v306 = vmax.f32 %v242, 0.0
  %v307 = vmax.f32 %v243, 0.0
  %v308 = vmax.f32 %v244, 0.0
  %v309 = vmax.f32 %v245, 0.0
  %v310 = vmax.f32 %v246, 0.0
  %v311 = vmax.f32 %v247, 0.0
  %v312 = vmax.f32 %v248, 0.0
  %v313 = vmax.f32 %v249, 0.0
  %v314 = vmax.f32 %v250, 0.0
  %v315 = vmax.f32 %v251, 0.0
  %v316 = vmax.f32 %v252, 0.0
  %v317 = vmax.f32 %v253, 0.0
  %v318 = vmax.f32 %v254, 0.0
  %v319 = vmax.f32 %v255, 0.0
  %v320 = vmax.f32 %v256, 0.0
  %v321 = vmax.f32 %v257, 0.0
  %v322 = vmax.f32 %v258, 0.0
  %v323 = vmax.f32 %v259, 0.0
  %v324 = vmax.f32 %v260, 0.0
  %v325 = vmax.f32 %v261, 0.0
  %v326 = vmax.f32 %v262, 0.0
  %v327 = vmax.f32 %v263, 0.0
  %v328 = vmax.f32 %v264, 0.0
  %v329 = vmax.f32 %v265, 0.0
  %v330 = vmax.f32 %v266, 0.0
  %v331 = vmax.f32 %v267, 0.0
  %v332 = vmax.f32 %v268, 0.0
  %v333 = vmax.f32 %v269, 0.0
  %v334 = vmax.f32 %v270, 0.0
  %v335 = vmax.f32 %v271, 0.0
  %v336 = vmax.f32 %v272, 0.0
  %v337 = vmax.f32 %v273, 0.0
  %v338 = vmax.f32 %v274, 0.0
  %v339 = vmax.f32 %v275, 0.0
  %v340 = vmax.f32 %v276, 0.0
  %v341 = vmax.f32 %v277, 0.0
  %v342 = vpack.c.bf16 %v278, %v278
  %v343 = vpack.c.bf16 %v279, %v279
  %v344 = vpack.c.bf16 %v280, %v280
  %v345 = vpack.c.bf16 %v281, %v281
  %v346 = vpack.c.bf16 %v282, %v282
  %v347 = vpack.c.bf16 %v283, %v283
  %v348 = vpack.c.bf16 %v284, %v284
  %v349 = vpack.c.bf16 %v285, %v285
  %v350 = vpack.c.bf16 %v286, %v286
  %v351 = vpack.c.bf16 %v287, %v287
  %v352 = vpack.c.bf16 %v288, %v288
  %v353 = vpack.c.bf16 %v289, %v289
  %v354 = vpack.c.bf16 %v290, %v290
  %v355 = vpack.c.bf16 %v291, %v291
  %v356 = vpack.c.bf16 %v292, %v292
  %v357 = vpack.c.bf16 %v293, %v293
  %v358 = vpack.c.bf16 %v294, %v294
  %v359 = vpack.c.bf16 %v295, %v295
  %v360 = vpack.c.bf16 %v296, %v296
  %v361 = vpack.c.bf16 %v297, %v297
  %v362 = vpack.c.bf16 %v298, %v298
  %v363 = vpack.c.bf16 %v299, %v299
  %v364 = vpack.c.bf16 %v300, %v300
  %v365 = vpack.c.bf16 %v301, %v301
  %v366 = vpack.c.bf16 %v302, %v302
  %v367 = vpack.c.bf16 %v303, %v303
  %v368 = vpack.c.bf16 %v304, %v304
  %v369 = vpack.c.bf16 %v305, %v305
  %v370 = vpack.c.bf16 %v306, %v306
  %v371 = vpack.c.bf16 %v307, %v307
  %v372 = vpack.c.bf16 %v308, %v308
  %v373 = vpack.c.bf16 %v309, %v309
  %v374 = vpack.c.bf16 %v310, %v310
  %v375 = vpack.c.bf16 %v311, %v311
  %v376 = vpack.c.bf16 %v312, %v312
  %v377 = vpack.c.bf16 %v313, %v313
  %v378 = vpack.c.bf16 %v314, %v314
  %v379 = vpack.c.bf16 %v315, %v315
  %v380 = vpack.c.bf16 %v316, %v316
  %v381 = vpack.c.bf16 %v317, %v317
  %v382 = vpack.c.bf16 %v318, %v318
  %v383 = vpack.c.bf16 %v319, %v319
  %v384 = vpack.c.bf16 %v320, %v320
  %v385 = vpack.c.bf16 %v321, %v321
  %v386 = vpack.c.bf16 %v322, %v322
  %v387 = vpack.c.bf16 %v323, %v323
  %v388 = vpack.c.bf16 %v324, %v324
  %v389 = vpack.c.bf16 %v325, %v325
  %v390 = vpack.c.bf16 %v326, %v326
  %v391 = vpack.c.bf16 %v327, %v327
  %v392 = vpack.c.bf16 %v328, %v328
  %v393 = vpack.c.bf16 %v329, %v329
  %v394 = vpack.c.bf16 %v330, %v330
  %v395 = vpack.c.bf16 %v331, %v331
  %v396 = vpack.c.bf16 %v332, %v332
  %v397 = vpack.c.bf16 %v333, %v333
  %v398 = vpack.c.bf16 %v334, %v334
  %v399 = vpack.c.bf16 %v335, %v335
  %v400 = vpack.c.bf16 %v336, %v336
  %v401 = vpack.c.bf16 %v337, %v337
  %v402 = vpack.c.bf16 %v338, %v338
  %v403 = vpack.c.bf16 %v339, %v339
  %v404 = vpack.c.bf16 %v340, %v340
  %v405 = vpack.c.bf16 %v341, %v341
  %406 = vst [vmem:[%s3] sm:$0xf] %v342
  %407 = vst [vmem:[%s3 + $0x4] sm:$0xf] %v343
  %408 = vst [vmem:[%s3 + $0x8] sm:$0xf] %v344
  %409 = vst [vmem:[%s3 + $0xc] sm:$0xf] %v345
  %410 = vst [vmem:[%s3 + $0x10] sm:$0xf] %v346
  %411 = vst [vmem:[%s3 + $0x14] sm:$0xf] %v347
  %412 = vst [vmem:[%s3 + $0x18] sm:$0xf] %v348
  %413 = vst [vmem:[%s3 + $0x1c] sm:$0xf] %v349
  %414 = vst [vmem:[%s3 + $0x20] sm:$0xf] %v350
  %415 = vst [vmem:[%s3 + $0x24] sm:$0xf] %v351
  %416 = vst [vmem:[%s3 + $0x28] sm:$0xf] %v352
  %417 = vst [vmem:[%s3 + $0x2c] sm:$0xf] %v353
  %418 = vst [vmem:[%s3 + $0x30] sm:$0xf] %v354
  %419 = vst [vmem:[%s3 + $0x34] sm:$0xf] %v355
  %420 = vst [vmem:[%s3 + $0x38] sm:$0xf] %v356
  %421 = vst [vmem:[%s3 + $0x3c] sm:$0xf] %v357
  %422 = vst [vmem:[%s3 + $0x40] sm:$0xf] %v358
  %423 = vst [vmem:[%s3 + $0x44] sm:$0xf] %v359
  %424 = vst [vmem:[%s3 + $0x48] sm:$0xf] %v360
  %425 = vst [vmem:[%s3 + $0x4c] sm:$0xf] %v361
  %426 = vst [vmem:[%s3 + $0x50] sm:$0xf] %v362
  %427 = vst [vmem:[%s3 + $0x54] sm:$0xf] %v363
  %428 = vst [vmem:[%s3 + $0x58] sm:$0xf] %v364
  %429 = vst [vmem:[%s3 + $0x5c] sm:$0xf] %v365
  %430 = vst [vmem:[%s3 + $0x60] sm:$0xf] %v366
  %431 = vst [vmem:[%s3 + $0x64] sm:$0xf] %v367
  %432 = vst [vmem:[%s3 + $0x68] sm:$0xf] %v368
  %433 = vst [vmem:[%s3 + $0x6c] sm:$0xf] %v369
  %434 = vst [vmem:[%s3 + $0x70] sm:$0xf] %v370
  %435 = vst [vmem:[%s3 + $0x74] sm:$0xf] %v371
  %436 = vst [vmem:[%s3 + $0x78] sm:$0xf] %v372
  %437 = vst [vmem:[%s3 + $0x7c] sm:$0xf] %v373
  %438 = vst [vmem:[%s3 + $0x80] sm:$0xf] %v374
  %439 = vst [vmem:[%s3 + $0x84] sm:$0xf] %v375
  %440 = vst [vmem:[%s3 + $0x88] sm:$0xf] %v376
  %441 = vst [vmem:[%s3 + $0x8c] sm:$0xf] %v377
  %442 = vst [vmem:[%s3 + $0x90] sm:$0xf] %v378
  %443 = vst [vmem:[%s3 + $0x94] sm:$0xf] %v379
  %444 = vst [vmem:[%s3 + $0x98] sm:$0xf] %v380
  %445 = vst [vmem:[%s3 + $0x9c] sm:$0xf] %v381
  %446 = vst [vmem:[%s3 + $0xa0] sm:$0xf] %v382
  %447 = vst [vmem:[%s3 + $0xa4] sm:$0xf] %v383
  %448 = vst [vmem:[%s3 + $0xa8] sm:$0xf] %v384
  %449 = vst [vmem:[%s3 + $0xac] sm:$0xf] %v385
  %450 = vst [vmem:[%s3 + $0xb0] sm:$0xf] %v386
  %451 = vst [vmem:[%s3 + $0xb4] sm:$0xf] %v387
  %452 = vst [vmem:[%s3 + $0xb8] sm:$0xf] %v388
  %453 = vst [vmem:[%s3 + $0xbc] sm:$0xf] %v389
  %454 = vst [vmem:[%s3 + $0xc0] sm:$0xf] %v390
  %455 = vst [vmem:[%s3 + $0xc4] sm:$0xf] %v391
  %456 = vst [vmem:[%s3 + $0xc8] sm:$0xf] %v392
  %457 = vst [vmem:[%s3 + $0xcc] sm:$0xf] %v393
  %458 = vst [vmem:[%s3 + $0xd0] sm:$0xf] %v394
  %459 = vst [vmem:[%s3 + $0xd4] sm:$0xf] %v395
  %460 = vst [vmem:[%s3 + $0xd8] sm:$0xf] %v396
  %461 = vst [vmem:[%s3 + $0xdc] sm:$0xf] %v397
  %462 = vst [vmem:[%s3 + $0xe0] sm:$0xf] %v398
  %463 = vst [vmem:[%s3 + $0xe4] sm:$0xf] %v399
  %464 = vst [vmem:[%s3 + $0xe8] sm:$0xf] %v400
  %465 = vst [vmem:[%s3 + $0xec] sm:$0xf] %v401
  %466 = vst [vmem:[%s3 + $0xf0] sm:$0xf] %v402
  %467 = vst [vmem:[%s3 + $0xf4] sm:$0xf] %v403
  %468 = vst [vmem:[%s3 + $0xf8] sm:$0xf] %v404
  %469 = vst [vmem:[%s3 + $0xfc] sm:$0xf] %v405
  // Predicated region
  $region14: #{residual_block_forward.9} parent=0 // pred_check
    _
  $region15: #{residual_block_forward.9} parent=0 // pred_check_branch
    %471 = sbr.rel (0) target = $region17
  $region16: #{residual_block_forward.9} parent=0 // pred_region
    _
  $region17: #{residual_block_forward.9} parent=0 // pred_fallthru
    _
  // Predicated region
  $region18: #{residual_block_forward.9} parent=0 // pred_check
    _
  $region19: #{residual_block_forward.9} parent=0 // pred_check_branch
    %473 = sbr.rel (0) target = $region21
  $region20: #{residual_block_forward.9} parent=0 // pred_region
    _
  $region21: #{residual_block_forward.9} parent=0 // pred_fallthru
    _

// kernel: residual_block_forward.8
$region0: #{residual_block_forward.8}
  #allocation0 [shape = 'u32[]', space=smem, size = 0x4, offset = 0x4, fixed_abs, tag = 'smem constant byte address 0x4 - core index']
  #allocation1 [shape = 'u32[72,128]{1,0:T(1,128)}', space=vmem, size = 0x9000, scoped, tag = 'internal scratch']
  %s0 = inlined_call_operand.vmem [shape: bf16[512,128], index: 0, kind: input, shape index: {}]
  %s1 = inlined_call_operand.vmem [shape: bf16[128,128], index: 1, kind: input, shape index: {}]
  %s2 = inlined_call_operand.vmem [shape: bf16[512,128], index: 2, kind: output, shape index: {0}]
  %s3 = inlined_call_operand.vmem [shape: f32[1,128], index: 3, kind: output, shape index: {1}]
  %s4 = inlined_call_operand.vmem [shape: f32[1,128], index: 4, kind: output, shape index: {2}]
  %5 = xla_tuple %s2, %s3, %s4
  %s6 = sld [smem:[#allocation0]]
  $region38: #{residual_block_forward.8} parent=0
    _
  %s8 = ssub.s32 1, %s6
  %s9 = scalar_select 0, %s8, %s6
  // Predicated region
  $region2: #{residual_block_forward.8} parent=0 // pred_check
    _
  $region3: #{residual_block_forward.8} parent=0 // pred_check_branch
    %11 = sbr.rel (0) target = $region5
  $region4: #{residual_block_forward.8} parent=0 // pred_region
    _
  $region5: #{residual_block_forward.8} parent=0 // pred_fallthru
    _
  // Predicated region
  $region6: #{residual_block_forward.8} parent=0 // pred_check
    _
  $region7: #{residual_block_forward.8} parent=0 // pred_check_branch
    %13 = sbr.rel (0) target = $region9
  $region8: #{residual_block_forward.8} parent=0 // pred_region
    _
  $region9: #{residual_block_forward.8} parent=0 // pred_fallthru
    _
  %p14 = scmp.eq.s32.totalorder 0, 0
  // Predicated region
  $region10: #{residual_block_forward.8} parent=0 // pred_check
    %p15 = pneg %p14
  $region11: #{residual_block_forward.8} parent=0 // pred_check_branch
    %17 = sbr.rel (%p15) target = $region13
  $region12: #{residual_block_forward.8} parent=0 // pred_region
    %18 = vst [vmem:[%s3] sm:$0x1] 0.0
    %19 = vst [vmem:[%s4] sm:$0x1] 0.0
  $region13: #{residual_block_forward.8} parent=0 // pred_fallthru
    _
  %v20 = vld [vmem:[%s0] sm:$0xf]
  %v21 = vld [vmem:[%s0 + $0x4] sm:$0xf]
  %v22 = vld [vmem:[%s0 + $0x8] sm:$0xf]
  %v23 = vld [vmem:[%s0 + $0xc] sm:$0xf]
  %v24 = vld [vmem:[%s0 + $0x10] sm:$0xf]
  %v25 = vld [vmem:[%s0 + $0x14] sm:$0xf]
  %v26 = vld [vmem:[%s0 + $0x18] sm:$0xf]
  %v27 = vld [vmem:[%s0 + $0x1c] sm:$0xf]
  %v28 = vld [vmem:[%s0 + $0x20] sm:$0xf]
  %v29 = vld [vmem:[%s0 + $0x24] sm:$0xf]
  %v30 = vld [vmem:[%s0 + $0x28] sm:$0xf]
  %v31 = vld [vmem:[%s0 + $0x2c] sm:$0xf]
  %v32 = vld [vmem:[%s0 + $0x30] sm:$0xf]
  %v33 = vld [vmem:[%s0 + $0x34] sm:$0xf]
  %v34 = vld [vmem:[%s0 + $0x38] sm:$0xf]
  %v35 = vld [vmem:[%s0 + $0x3c] sm:$0xf]
  %v36 = vld [vmem:[%s0 + $0x40] sm:$0xf]
  %v37 = vld [vmem:[%s0 + $0x44] sm:$0xf]
  %v38 = vld [vmem:[%s0 + $0x48] sm:$0xf]
  %v39 = vld [vmem:[%s0 + $0x4c] sm:$0xf]
  %v40 = vld [vmem:[%s0 + $0x50] sm:$0xf]
  %v41 = vld [vmem:[%s0 + $0x54] sm:$0xf]
  %v42 = vld [vmem:[%s0 + $0x58] sm:$0xf]
  %v43 = vld [vmem:[%s0 + $0x5c] sm:$0xf]
  %v44 = vld [vmem:[%s0 + $0x60] sm:$0xf]
  %v45 = vld [vmem:[%s0 + $0x64] sm:$0xf]
  %v46 = vld [vmem:[%s0 + $0x68] sm:$0xf]
  %v47 = vld [vmem:[%s0 + $0x6c] sm:$0xf]
  %v48 = vld [vmem:[%s0 + $0x70] sm:$0xf]
  %v49 = vld [vmem:[%s0 + $0x74] sm:$0xf]
  %v50 = vld [vmem:[%s0 + $0x78] sm:$0xf]
  %v51 = vld [vmem:[%s0 + $0x7c] sm:$0xf]
  %v52 = vld [vmem:[%s0 + $0x80] sm:$0xf]
  %v53 = vld [vmem:[%s0 + $0x84] sm:$0xf]
  %v54 = vld [vmem:[%s0 + $0x88] sm:$0xf]
  %v55 = vld [vmem:[%s0 + $0x8c] sm:$0xf]
  %v56 = vld [vmem:[%s0 + $0x90] sm:$0xf]
  %v57 = vld [vmem:[%s0 + $0x94] sm:$0xf]
  %v58 = vld [vmem:[%s0 + $0x98] sm:$0xf]
  %v59 = vld [vmem:[%s0 + $0x9c] sm:$0xf]
  %v60 = vld [vmem:[%s0 + $0xa0] sm:$0xf]
  %v61 = vld [vmem:[%s0 + $0xa4] sm:$0xf]
  %v62 = vld [vmem:[%s0 + $0xa8] sm:$0xf]
  %v63 = vld [vmem:[%s0 + $0xac] sm:$0xf]
  %v64 = vld [vmem:[%s0 + $0xb0] sm:$0xf]
  %v65 = vld [vmem:[%s0 + $0xb4] sm:$0xf]
  %v66 = vld [vmem:[%s0 + $0xb8] sm:$0xf]
  %v67 = vld [vmem:[%s0 + $0xbc] sm:$0xf]
  %v68 = vld [vmem:[%s0 + $0xc0] sm:$0xf]
  %v69 = vld [vmem:[%s0 + $0xc4] sm:$0xf]
  %v70 = vld [vmem:[%s0 + $0xc8] sm:$0xf]
  %v71 = vld [vmem:[%s0 + $0xcc] sm:$0xf]
  %v72 = vld [vmem:[%s0 + $0xd0] sm:$0xf]
  %v73 = vld [vmem:[%s0 + $0xd4] sm:$0xf]
  %v74 = vld [vmem:[%s0 + $0xd8] sm:$0xf]
  %v75 = vld [vmem:[%s0 + $0xdc] sm:$0xf]
  %v76 = vld [vmem:[%s0 + $0xe0] sm:$0xf]
  %v77 = vld [vmem:[%s0 + $0xe4] sm:$0xf]
  %v78 = vld [vmem:[%s0 + $0xe8] sm:$0xf]
  %v79 = vld [vmem:[%s0 + $0xec] sm:$0xf]
  %v80 = vld [vmem:[%s0 + $0xf0] sm:$0xf]
  %v81 = vld [vmem:[%s0 + $0xf4] sm:$0xf]
  %v82 = vld [vmem:[%s0 + $0xf8] sm:$0xf]
  %v83 = vld [vmem:[%s0 + $0xfc] sm:$0xf]
  %v84 = vld [vmem:[%s1] sm:$0xf]
  %v85 = vld [vmem:[%s1 + $0x4] sm:$0xf]
  %v86 = vld [vmem:[%s1 + $0x8] sm:$0xf]
  %v87 = vld [vmem:[%s1 + $0xc] sm:$0xf]
  %v88 = vld [vmem:[%s1 + $0x10] sm:$0xf]
  %v89 = vld [vmem:[%s1 + $0x14] sm:$0xf]
  %v90 = vld [vmem:[%s1 + $0x18] sm:$0xf]
  %v91 = vld [vmem:[%s1 + $0x1c] sm:$0xf]
  %v92 = vld [vmem:[%s1 + $0x20] sm:$0xf]
  %v93 = vld [vmem:[%s1 + $0x24] sm:$0xf]
  %v94 = vld [vmem:[%s1 + $0x28] sm:$0xf]
  %v95 = vld [vmem:[%s1 + $0x2c] sm:$0xf]
  %v96 = vld [vmem:[%s1 + $0x30] sm:$0xf]
  %v97 = vld [vmem:[%s1 + $0x34] sm:$0xf]
  %v98 = vld [vmem:[%s1 + $0x38] sm:$0xf]
  %v99 = vld [vmem:[%s1 + $0x3c] sm:$0xf]
  %v164 = vunpack.c.l.b16 %v20
  %v165 = vunpack.c.l.b16 %v21
  %v166 = vunpack.c.l.b16 %v22
  %v167 = vunpack.c.l.b16 %v23
  %v168 = vunpack.c.l.b16 %v24
  %v169 = vunpack.c.l.b16 %v25
  %v170 = vunpack.c.l.b16 %v26
  %v171 = vunpack.c.l.b16 %v27
  %v172 = vunpack.c.l.b16 %v28
  %v173 = vunpack.c.l.b16 %v29
  %v174 = vunpack.c.l.b16 %v30
  %v175 = vunpack.c.l.b16 %v31
  %v176 = vunpack.c.l.b16 %v32
  %v177 = vunpack.c.l.b16 %v33
  %v178 = vunpack.c.l.b16 %v34
  %v179 = vunpack.c.l.b16 %v35
  %v180 = vunpack.c.l.b16 %v36
  %v181 = vunpack.c.l.b16 %v37
  %v182 = vunpack.c.l.b16 %v38
  %v183 = vunpack.c.l.b16 %v39
  %v184 = vunpack.c.l.b16 %v40
  %v185 = vunpack.c.l.b16 %v41
  %v186 = vunpack.c.l.b16 %v42
  %v187 = vunpack.c.l.b16 %v43
  %v188 = vunpack.c.l.b16 %v44
  %v189 = vunpack.c.l.b16 %v45
  %v190 = vunpack.c.l.b16 %v46
  %v191 = vunpack.c.l.b16 %v47
  %v192 = vunpack.c.l.b16 %v48
  %v193 = vunpack.c.l.b16 %v49
  %v194 = vunpack.c.l.b16 %v50
  %v195 = vunpack.c.l.b16 %v51
  %v196 = vunpack.c.l.b16 %v52
  %v197 = vunpack.c.l.b16 %v53
  %v198 = vunpack.c.l.b16 %v54
  %v199 = vunpack.c.l.b16 %v55
  %v200 = vunpack.c.l.b16 %v56
  %v201 = vunpack.c.l.b16 %v57
  %v202 = vunpack.c.l.b16 %v58
  %v203 = vunpack.c.l.b16 %v59
  %v204 = vunpack.c.l.b16 %v60
  %v205 = vunpack.c.l.b16 %v61
  %v206 = vunpack.c.l.b16 %v62
  %v207 = vunpack.c.l.b16 %v63
  %v208 = vunpack.c.l.b16 %v64
  %v209 = vunpack.c.l.b16 %v65
  %v210 = vunpack.c.l.b16 %v66
  %v211 = vunpack.c.l.b16 %v67
  %v212 = vunpack.c.l.b16 %v68
  %v213 = vunpack.c.l.b16 %v69
  %v214 = vunpack.c.l.b16 %v70
  %v215 = vunpack.c.l.b16 %v71
  %v216 = vunpack.c.l.b16 %v72
  %v217 = vunpack.c.l.b16 %v73
  %v218 = vunpack.c.l.b16 %v74
  %v219 = vunpack.c.l.b16 %v75
  %v220 = vunpack.c.l.b16 %v76
  %v221 = vunpack.c.l.b16 %v77
  %v222 = vunpack.c.l.b16 %v78
  %v223 = vunpack.c.l.b16 %v79
  %v224 = vunpack.c.l.b16 %v80
  %v225 = vunpack.c.l.b16 %v81
  %v226 = vunpack.c.l.b16 %v82
  %v227 = vunpack.c.l.b16 %v83
  %v228 = vpack.c.b16 %v165, %v164
  %v229 = vpack.c.b16 %v167, %v166
  %v230 = vpack.c.b16 %v169, %v168
  %v231 = vpack.c.b16 %v171, %v170
  %v232 = vpack.c.b16 %v173, %v172
  %v233 = vpack.c.b16 %v175, %v174
  %v234 = vpack.c.b16 %v177, %v176
  %v235 = vpack.c.b16 %v179, %v178
  %v236 = vpack.c.b16 %v181, %v180
  %v237 = vpack.c.b16 %v183, %v182
  %v238 = vpack.c.b16 %v185, %v184
  %v239 = vpack.c.b16 %v187, %v186
  %v240 = vpack.c.b16 %v189, %v188
  %v241 = vpack.c.b16 %v191, %v190
  %v242 = vpack.c.b16 %v193, %v192
  %v243 = vpack.c.b16 %v195, %v194
  %v244 = vpack.c.b16 %v197, %v196
  %v245 = vpack.c.b16 %v199, %v198
  %v246 = vpack.c.b16 %v201, %v200
  %v247 = vpack.c.b16 %v203, %v202
  %v248 = vpack.c.b16 %v205, %v204
  %v249 = vpack.c.b16 %v207, %v206
  %v250 = vpack.c.b16 %v209, %v208
  %v251 = vpack.c.b16 %v211, %v210
  %v252 = vpack.c.b16 %v213, %v212
  %v253 = vpack.c.b16 %v215, %v214
  %v254 = vpack.c.b16 %v217, %v216
  %v255 = vpack.c.b16 %v219, %v218
  %v256 = vpack.c.b16 %v221, %v220
  %v257 = vpack.c.b16 %v223, %v222
  %v258 = vpack.c.b16 %v225, %v224
  %v259 = vpack.c.b16 %v227, %v226
  %v308 = vunpack.c.l.b16 %v84
  %v309 = vunpack.c.l.b16 %v85
  %v310 = vunpack.c.l.b16 %v86
  %v311 = vunpack.c.l.b16 %v87
  %v312 = vunpack.c.l.b16 %v88
  %v313 = vunpack.c.l.b16 %v89
  %v314 = vunpack.c.l.b16 %v90
  %v315 = vunpack.c.l.b16 %v91
  %v316 = vunpack.c.l.b16 %v92
  %v317 = vunpack.c.l.b16 %v93
  %v318 = vunpack.c.l.b16 %v94
  %v319 = vunpack.c.l.b16 %v95
  %v320 = vunpack.c.l.b16 %v96
  %v321 = vunpack.c.l.b16 %v97
  %v322 = vunpack.c.l.b16 %v98
  %v323 = vunpack.c.l.b16 %v99
  %v324 = vpack.c.b16 %v309, %v308
  %v325 = vpack.c.b16 %v311, %v310
  %v326 = vpack.c.b16 %v313, %v312
  %v327 = vpack.c.b16 %v315, %v314
  %v328 = vpack.c.b16 %v317, %v316
  %v329 = vpack.c.b16 %v319, %v318
  %v330 = vpack.c.b16 %v321, %v320
  %v331 = vpack.c.b16 %v323, %v322
  %340 = vmatpush.bf16.msra.mxu0 %v331
  %341 = vmatpush.bf16.msra.mxu0 %v330
  %342 = vmatpush.bf16.msra.mxu0 %v329
  %343 = vmatpush.bf16.msra.mxu0 %v328
  %344 = vmatpush.bf16.msra.mxu0 %v327
  %345 = vmatpush.bf16.msra.mxu0 %v326
  %346 = vmatpush.bf16.msra.mxu0 %v325
  %347 = vmatpush.bf16.msra.mxu0 %v324
  %348 = vmatmul.bf16.gmra.mxu0 %v228
  %v349 = vpop.f32.mrf.mxu0
  %v350 = vadd.f32 0.0, %v349
  %v351 = vpop.f32.mrf.mxu0
  %v352 = vadd.f32 0.0, %v351
  %353 = vmatmul.bf16.gmra.mxu0 %v229
  %v354 = vpop.f32.mrf.mxu0
  %v355 = vadd.f32 0.0, %v354
  %v356 = vpop.f32.mrf.mxu0
  %v357 = vadd.f32 0.0, %v356
  %358 = vmatmul.bf16.gmra.mxu0 %v230
  %v359 = vpop.f32.mrf.mxu0
  %v360 = vadd.f32 0.0, %v359
  %v361 = vpop.f32.mrf.mxu0
  %v362 = vadd.f32 0.0, %v361
  %363 = vmatmul.bf16.gmra.mxu0 %v231
  %v364 = vpop.f32.mrf.mxu0
  %v365 = vadd.f32 0.0, %v364
  %v366 = vpop.f32.mrf.mxu0
  %v367 = vadd.f32 0.0, %v366
  %368 = vmatmul.bf16.gmra.mxu0 %v232
  %v369 = vpop.f32.mrf.mxu0
  %v370 = vadd.f32 0.0, %v369
  %v371 = vpop.f32.mrf.mxu0
  %v372 = vadd.f32 0.0, %v371
  %373 = vmatmul.bf16.gmra.mxu0 %v233
  %v374 = vpop.f32.mrf.mxu0
  %v375 = vadd.f32 0.0, %v374
  %v376 = vpop.f32.mrf.mxu0
  %v377 = vadd.f32 0.0, %v376
  %378 = vmatmul.bf16.gmra.mxu0 %v234
  %v379 = vpop.f32.mrf.mxu0
  %v380 = vadd.f32 0.0, %v379
  %v381 = vpop.f32.mrf.mxu0
  %v382 = vadd.f32 0.0, %v381
  %383 = vmatmul.bf16.gmra.mxu0 %v235
  %v384 = vpop.f32.mrf.mxu0
  %v385 = vadd.f32 0.0, %v384
  %v386 = vpop.f32.mrf.mxu0
  %v387 = vadd.f32 0.0, %v386
  %388 = vmatmul.bf16.gmra.mxu0 %v236
  %v389 = vpop.f32.mrf.mxu0
  %v390 = vadd.f32 0.0, %v389
  %v391 = vpop.f32.mrf.mxu0
  %v392 = vadd.f32 0.0, %v391
  %393 = vmatmul.bf16.gmra.mxu0 %v237
  %v394 = vpop.f32.mrf.mxu0
  %v395 = vadd.f32 0.0, %v394
  %v396 = vpop.f32.mrf.mxu0
  %v397 = vadd.f32 0.0, %v396
  %398 = vmatmul.bf16.gmra.mxu0 %v238
  %v399 = vpop.f32.mrf.mxu0
  %v400 = vadd.f32 0.0, %v399
  %v401 = vpop.f32.mrf.mxu0
  %v402 = vadd.f32 0.0, %v401
  %403 = vmatmul.bf16.gmra.mxu0 %v239
  %v404 = vpop.f32.mrf.mxu0
  %v405 = vadd.f32 0.0, %v404
  %v406 = vpop.f32.mrf.mxu0
  %v407 = vadd.f32 0.0, %v406
  %408 = vmatmul.bf16.gmra.mxu0 %v240
  %v409 = vpop.f32.mrf.mxu0
  %v410 = vadd.f32 0.0, %v409
  %v411 = vpop.f32.mrf.mxu0
  %v412 = vadd.f32 0.0, %v411
  %413 = vmatmul.bf16.gmra.mxu0 %v241
  %v414 = vpop.f32.mrf.mxu0
  %v415 = vadd.f32 0.0, %v414
  %v416 = vpop.f32.mrf.mxu0
  %v417 = vadd.f32 0.0, %v416
  %418 = vmatmul.bf16.gmra.mxu0 %v242
  %v419 = vpop.f32.mrf.mxu0
  %v420 = vadd.f32 0.0, %v419
  %v421 = vpop.f32.mrf.mxu0
  %v422 = vadd.f32 0.0, %v421
  %423 = vmatmul.bf16.gmra.mxu0 %v243
  %v424 = vpop.f32.mrf.mxu0
  %v425 = vadd.f32 0.0, %v424
  %v426 = vpop.f32.mrf.mxu0
  %v427 = vadd.f32 0.0, %v426
  %428 = vmatmul.bf16.gmra.mxu0 %v244
  %v429 = vpop.f32.mrf.mxu0
  %v430 = vadd.f32 0.0, %v429
  %v431 = vpop.f32.mrf.mxu0
  %v432 = vadd.f32 0.0, %v431
  %433 = vmatmul.bf16.gmra.mxu0 %v245
  %v434 = vpop.f32.mrf.mxu0
  %v435 = vadd.f32 0.0, %v434
  %v436 = vpop.f32.mrf.mxu0
  %v437 = vadd.f32 0.0, %v436
  %438 = vmatmul.bf16.gmra.mxu0 %v246
  %v439 = vpop.f32.mrf.mxu0
  %v440 = vadd.f32 0.0, %v439
  %v441 = vpop.f32.mrf.mxu0
  %v442 = vadd.f32 0.0, %v441
  %443 = vmatmul.bf16.gmra.mxu0 %v247
  %v444 = vpop.f32.mrf.mxu0
  %v445 = vadd.f32 0.0, %v444
  %v446 = vpop.f32.mrf.mxu0
  %v447 = vadd.f32 0.0, %v446
  %448 = vmatmul.bf16.gmra.mxu0 %v248
  %v449 = vpop.f32.mrf.mxu0
  %v450 = vadd.f32 0.0, %v449
  %v451 = vpop.f32.mrf.mxu0
  %v452 = vadd.f32 0.0, %v451
  %453 = vmatmul.bf16.gmra.mxu0 %v249
  %v454 = vpop.f32.mrf.mxu0
  %v455 = vadd.f32 0.0, %v454
  %v456 = vpop.f32.mrf.mxu0
  %v457 = vadd.f32 0.0, %v456
  %458 = vmatmul.bf16.gmra.mxu0 %v250
  %v459 = vpop.f32.mrf.mxu0
  %v460 = vadd.f32 0.0, %v459
  %v461 = vpop.f32.mrf.mxu0
  %v462 = vadd.f32 0.0, %v461
  %463 = vmatmul.bf16.gmra.mxu0 %v251
  %v464 = vpop.f32.mrf.mxu0
  %v465 = vadd.f32 0.0, %v464
  %v466 = vpop.f32.mrf.mxu0
  %v467 = vadd.f32 0.0, %v466
  %468 = vmatmul.bf16.gmra.mxu0 %v252
  %v469 = vpop.f32.mrf.mxu0
  %v470 = vadd.f32 0.0, %v469
  %v471 = vpop.f32.mrf.mxu0
  %v472 = vadd.f32 0.0, %v471
  %473 = vmatmul.bf16.gmra.mxu0 %v253
  %v474 = vpop.f32.mrf.mxu0
  %v475 = vadd.f32 0.0, %v474
  %v476 = vpop.f32.mrf.mxu0
  %v477 = vadd.f32 0.0, %v476
  %478 = vmatmul.bf16.gmra.mxu0 %v254
  %v479 = vpop.f32.mrf.mxu0
  %v480 = vadd.f32 0.0, %v479
  %v481 = vpop.f32.mrf.mxu0
  %v482 = vadd.f32 0.0, %v481
  %483 = vmatmul.bf16.gmra.mxu0 %v255
  %v484 = vpop.f32.mrf.mxu0
  %v485 = vadd.f32 0.0, %v484
  %v486 = vpop.f32.mrf.mxu0
  %v487 = vadd.f32 0.0, %v486
  %488 = vmatmul.bf16.gmra.mxu0 %v256
  %v489 = vpop.f32.mrf.mxu0
  %v490 = vadd.f32 0.0, %v489
  %v491 = vpop.f32.mrf.mxu0
  %v492 = vadd.f32 0.0, %v491
  %493 = vmatmul.bf16.gmra.mxu0 %v257
  %v494 = vpop.f32.mrf.mxu0
  %v495 = vadd.f32 0.0, %v494
  %v496 = vpop.f32.mrf.mxu0
  %v497 = vadd.f32 0.0, %v496
  %498 = vmatmul.bf16.gmra.mxu0 %v258
  %v499 = vpop.f32.mrf.mxu0
  %v500 = vadd.f32 0.0, %v499
  %v501 = vpop.f32.mrf.mxu0
  %v502 = vadd.f32 0.0, %v501
  %503 = vmatmul.bf16.gmra.mxu0 %v259
  %v504 = vpop.f32.mrf.mxu0
  %v505 = vadd.f32 0.0, %v504
  %v506 = vpop.f32.mrf.mxu0
  %v507 = vadd.f32 0.0, %v506
  %508 = vdwg.mxu0
  %v509 = vpack.c.bf16 %v350, %v350
  %v510 = vpack.c.bf16 %v352, %v352
  %v511 = vpack.c.bf16 %v355, %v355
  %v512 = vpack.c.bf16 %v357, %v357
  %v513 = vpack.c.bf16 %v360, %v360
  %v514 = vpack.c.bf16 %v362, %v362
  %v515 = vpack.c.bf16 %v365, %v365
  %v516 = vpack.c.bf16 %v367, %v367
  %v517 = vpack.c.bf16 %v370, %v370
  %v518 = vpack.c.bf16 %v372, %v372
  %v519 = vpack.c.bf16 %v375, %v375
  %v520 = vpack.c.bf16 %v377, %v377
  %v521 = vpack.c.bf16 %v380, %v380
  %v522 = vpack.c.bf16 %v382, %v382
  %v523 = vpack.c.bf16 %v385, %v385
  %v524 = vpack.c.bf16 %v387, %v387
  %v525 = vpack.c.bf16 %v390, %v390
  %v526 = vpack.c.bf16 %v392, %v392
  %v527 = vpack.c.bf16 %v395, %v395
  %v528 = vpack.c.bf16 %v397, %v397
  %v529 = vpack.c.bf16 %v400, %v400
  %v530 = vpack.c.bf16 %v402, %v402
  %v531 = vpack.c.bf16 %v405, %v405
  %v532 = vpack.c.bf16 %v407, %v407
  %v533 = vpack.c.bf16 %v410, %v410
  %v534 = vpack.c.bf16 %v412, %v412
  %v535 = vpack.c.bf16 %v415, %v415
  %v536 = vpack.c.bf16 %v417, %v417
  %v537 = vpack.c.bf16 %v420, %v420
  %v538 = vpack.c.bf16 %v422, %v422
  %v539 = vpack.c.bf16 %v425, %v425
  %v540 = vpack.c.bf16 %v427, %v427
  %v541 = vpack.c.bf16 %v430, %v430
  %v542 = vpack.c.bf16 %v432, %v432
  %v543 = vpack.c.bf16 %v435, %v435
  %v544 = vpack.c.bf16 %v437, %v437
  %v545 = vpack.c.bf16 %v440, %v440
  %v546 = vpack.c.bf16 %v442, %v442
  %v547 = vpack.c.bf16 %v445, %v445
  %v548 = vpack.c.bf16 %v447, %v447
  %v549 = vpack.c.bf16 %v450, %v450
  %v550 = vpack.c.bf16 %v452, %v452
  %v551 = vpack.c.bf16 %v455, %v455
  %v552 = vpack.c.bf16 %v457, %v457
  %v553 = vpack.c.bf16 %v460, %v460
  %v554 = vpack.c.bf16 %v462, %v462
  %v555 = vpack.c.bf16 %v465, %v465
  %v556 = vpack.c.bf16 %v467, %v467
  %v557 = vpack.c.bf16 %v470, %v470
  %v558 = vpack.c.bf16 %v472, %v472
  %v559 = vpack.c.bf16 %v475, %v475
  %v560 = vpack.c.bf16 %v477, %v477
  %v561 = vpack.c.bf16 %v480, %v480
  %v562 = vpack.c.bf16 %v482, %v482
  %v563 = vpack.c.bf16 %v485, %v485
  %v564 = vpack.c.bf16 %v487, %v487
  %v565 = vpack.c.bf16 %v490, %v490
  %v566 = vpack.c.bf16 %v492, %v492
  %v567 = vpack.c.bf16 %v495, %v495
  %v568 = vpack.c.bf16 %v497, %v497
  %v569 = vpack.c.bf16 %v500, %v500
  %v570 = vpack.c.bf16 %v502, %v502
  %v571 = vpack.c.bf16 %v505, %v505
  %v572 = vpack.c.bf16 %v507, %v507
  %573 = vst [vmem:[%s2] sm:$0xf] %v509
  %574 = vst [vmem:[%s2 + $0x4] sm:$0xf] %v510
  %575 = vst [vmem:[%s2 + $0x8] sm:$0xf] %v511
  %576 = vst [vmem:[%s2 + $0xc] sm:$0xf] %v512
  %577 = vst [vmem:[%s2 + $0x10] sm:$0xf] %v513
  %578 = vst [vmem:[%s2 + $0x14] sm:$0xf] %v514
  %579 = vst [vmem:[%s2 + $0x18] sm:$0xf] %v515
  %580 = vst [vmem:[%s2 + $0x1c] sm:$0xf] %v516
  %581 = vst [vmem:[%s2 + $0x20] sm:$0xf] %v517
  %582 = vst [vmem:[%s2 + $0x24] sm:$0xf] %v518
  %583 = vst [vmem:[%s2 + $0x28] sm:$0xf] %v519
  %584 = vst [vmem:[%s2 + $0x2c] sm:$0xf] %v520
  %585 = vst [vmem:[%s2 + $0x30] sm:$0xf] %v521
  %586 = vst [vmem:[%s2 + $0x34] sm:$0xf] %v522
  %587 = vst [vmem:[%s2 + $0x38] sm:$0xf] %v523
  %588 = vst [vmem:[%s2 + $0x3c] sm:$0xf] %v524
  %589 = vst [vmem:[%s2 + $0x40] sm:$0xf] %v525
  %590 = vst [vmem:[%s2 + $0x44] sm:$0xf] %v526
  %591 = vst [vmem:[%s2 + $0x48] sm:$0xf] %v527
  %592 = vst [vmem:[%s2 + $0x4c] sm:$0xf] %v528
  %593 = vst [vmem:[%s2 + $0x50] sm:$0xf] %v529
  %594 = vst [vmem:[%s2 + $0x54] sm:$0xf] %v530
  %595 = vst [vmem:[%s2 + $0x58] sm:$0xf] %v531
  %596 = vst [vmem:[%s2 + $0x5c] sm:$0xf] %v532
  %597 = vst [vmem:[%s2 + $0x60] sm:$0xf] %v533
  %598 = vst [vmem:[%s2 + $0x64] sm:$0xf] %v534
  %599 = vst [vmem:[%s2 + $0x68] sm:$0xf] %v535
  %600 = vst [vmem:[%s2 + $0x6c] sm:$0xf] %v536
  %601 = vst [vmem:[%s2 + $0x70] sm:$0xf] %v537
  %602 = vst [vmem:[%s2 + $0x74] sm:$0xf] %v538
  %603 = vst [vmem:[%s2 + $0x78] sm:$0xf] %v539
  %604 = vst [vmem:[%s2 + $0x7c] sm:$0xf] %v540
  %605 = vst [vmem:[%s2 + $0x80] sm:$0xf] %v541
  %606 = vst [vmem:[%s2 + $0x84] sm:$0xf] %v542
  %607 = vst [vmem:[%s2 + $0x88] sm:$0xf] %v543
  %608 = vst [vmem:[%s2 + $0x8c] sm:$0xf] %v544
  %609 = vst [vmem:[%s2 + $0x90] sm:$0xf] %v545
  %610 = vst [vmem:[%s2 + $0x94] sm:$0xf] %v546
  %611 = vst [vmem:[%s2 + $0x98] sm:$0xf] %v547
  %612 = vst [vmem:[%s2 + $0x9c] sm:$0xf] %v548
  %613 = vst [vmem:[%s2 + $0xa0] sm:$0xf] %v549
  %614 = vst [vmem:[%s2 + $0xa4] sm:$0xf] %v550
  %615 = vst [vmem:[%s2 + $0xa8] sm:$0xf] %v551
  %616 = vst [vmem:[%s2 + $0xac] sm:$0xf] %v552
  %617 = vst [vmem:[%s2 + $0xb0] sm:$0xf] %v553
  %618 = vst [vmem:[%s2 + $0xb4] sm:$0xf] %v554
  %619 = vst [vmem:[%s2 + $0xb8] sm:$0xf] %v555
  %620 = vst [vmem:[%s2 + $0xbc] sm:$0xf] %v556
  %621 = vst [vmem:[%s2 + $0xc0] sm:$0xf] %v557
  %622 = vst [vmem:[%s2 + $0xc4] sm:$0xf] %v558
  %623 = vst [vmem:[%s2 + $0xc8] sm:$0xf] %v559
  %624 = vst [vmem:[%s2 + $0xcc] sm:$0xf] %v560
  %625 = vst [vmem:[%s2 + $0xd0] sm:$0xf] %v561
  %626 = vst [vmem:[%s2 + $0xd4] sm:$0xf] %v562
  %627 = vst [vmem:[%s2 + $0xd8] sm:$0xf] %v563
  %628 = vst [vmem:[%s2 + $0xdc] sm:$0xf] %v564
  %629 = vst [vmem:[%s2 + $0xe0] sm:$0xf] %v565
  %630 = vst [vmem:[%s2 + $0xe4] sm:$0xf] %v566
  %631 = vst [vmem:[%s2 + $0xe8] sm:$0xf] %v567
  %632 = vst [vmem:[%s2 + $0xec] sm:$0xf] %v568
  %633 = vst [vmem:[%s2 + $0xf0] sm:$0xf] %v569
  %634 = vst [vmem:[%s2 + $0xf4] sm:$0xf] %v570
  %635 = vst [vmem:[%s2 + $0xf8] sm:$0xf] %v571
  %636 = vst [vmem:[%s2 + $0xfc] sm:$0xf] %v572
  %v637 = vunpack.c.l.bf16 %v509
  %v638 = vunpack.c.l.bf16 %v510
  %v639 = vunpack.c.l.bf16 %v511
  %v640 = vunpack.c.l.bf16 %v512
  %v641 = vunpack.c.l.bf16 %v513
  %v642 = vunpack.c.l.bf16 %v514
  %v643 = vunpack.c.l.bf16 %v515
  %v644 = vunpack.c.l.bf16 %v516
  %v645 = vunpack.c.l.bf16 %v517
  %v646 = vunpack.c.l.bf16 %v518
  %v647 = vunpack.c.l.bf16 %v519
  %v648 = vunpack.c.l.bf16 %v520
  %v649 = vunpack.c.l.bf16 %v521
  %v650 = vunpack.c.l.bf16 %v522
  %v651 = vunpack.c.l.bf16 %v523
  %v652 = vunpack.c.l.bf16 %v524
  %v653 = vunpack.c.l.bf16 %v525
  %v654 = vunpack.c.l.bf16 %v526
  %v655 = vunpack.c.l.bf16 %v527
  %v656 = vunpack.c.l.bf16 %v528
  %v657 = vunpack.c.l.bf16 %v529
  %v658 = vunpack.c.l.bf16 %v530
  %v659 = vunpack.c.l.bf16 %v531
  %v660 = vunpack.c.l.bf16 %v532
  %v661 = vunpack.c.l.bf16 %v533
  %v662 = vunpack.c.l.bf16 %v534
  %v663 = vunpack.c.l.bf16 %v535
  %v664 = vunpack.c.l.bf16 %v536
  %v665 = vunpack.c.l.bf16 %v537
  %v666 = vunpack.c.l.bf16 %v538
  %v667 = vunpack.c.l.bf16 %v539
  %v668 = vunpack.c.l.bf16 %v540
  %v669 = vunpack.c.l.bf16 %v541
  %v670 = vunpack.c.l.bf16 %v542
  %v671 = vunpack.c.l.bf16 %v543
  %v672 = vunpack.c.l.bf16 %v544
  %v673 = vunpack.c.l.bf16 %v545
  %v674 = vunpack.c.l.bf16 %v546
  %v675 = vunpack.c.l.bf16 %v547
  %v676 = vunpack.c.l.bf16 %v548
  %v677 = vunpack.c.l.bf16 %v549
  %v678 = vunpack.c.l.bf16 %v550
  %v679 = vunpack.c.l.bf16 %v551
  %v680 = vunpack.c.l.bf16 %v552
  %v681 = vunpack.c.l.bf16 %v553
  %v682 = vunpack.c.l.bf16 %v554
  %v683 = vunpack.c.l.bf16 %v555
  %v684 = vunpack.c.l.bf16 %v556
  %v685 = vunpack.c.l.bf16 %v557
  %v686 = vunpack.c.l.bf16 %v558
  %v687 = vunpack.c.l.bf16 %v559
  %v688 = vunpack.c.l.bf16 %v560
  %v689 = vunpack.c.l.bf16 %v561
  %v690 = vunpack.c.l.bf16 %v562
  %v691 = vunpack.c.l.bf16 %v563
  %v692 = vunpack.c.l.bf16 %v564
  %v693 = vunpack.c.l.bf16 %v565
  %v694 = vunpack.c.l.bf16 %v566
  %v695 = vunpack.c.l.bf16 %v567
  %v696 = vunpack.c.l.bf16 %v568
  %v697 = vunpack.c.l.bf16 %v569
  %v698 = vunpack.c.l.bf16 %v570
  %v699 = vunpack.c.l.bf16 %v571
  %v700 = vunpack.c.l.bf16 %v572
  %v701 = vld [vmem:[%s3] sm:$0x1]
  %v702 = vadd.f32 %v637, %v638
  %v703 = vadd.f32 %v702, %v639
  %v704 = vadd.f32 %v703, %v640
  %v705 = vadd.f32 %v704, %v641
  %v706 = vadd.f32 %v705, %v642
  %v707 = vadd.f32 %v706, %v643
  %v708 = vadd.f32 %v707, %v644
  %v709 = vadd.f32 %v708, %v645
  %v710 = vadd.f32 %v709, %v646
  %v711 = vadd.f32 %v710, %v647
  %v712 = vadd.f32 %v711, %v648
  %v713 = vadd.f32 %v712, %v649
  %v714 = vadd.f32 %v713, %v650
  %v715 = vadd.f32 %v714, %v651
  %v716 = vadd.f32 %v715, %v652
  %v717 = vadd.f32 %v716, %v653
  %v718 = vadd.f32 %v717, %v654
  %v719 = vadd.f32 %v718, %v655
  %v720 = vadd.f32 %v719, %v656
  %v721 = vadd.f32 %v720, %v657
  %v722 = vadd.f32 %v721, %v658
  %v723 = vadd.f32 %v722, %v659
  %v724 = vadd.f32 %v723, %v660
  %v725 = vadd.f32 %v724, %v661
  %v726 = vadd.f32 %v725, %v662
  %v727 = vadd.f32 %v726, %v663
  %v728 = vadd.f32 %v727, %v664
  %v729 = vadd.f32 %v728, %v665
  %v730 = vadd.f32 %v729, %v666
  %v731 = vadd.f32 %v730, %v667
  %v732 = vadd.f32 %v731, %v668
  %v733 = vadd.f32 %v732, %v669
  %v734 = vadd.f32 %v733, %v670
  %v735 = vadd.f32 %v734, %v671
  %v736 = vadd.f32 %v735, %v672
  %v737 = vadd.f32 %v736, %v673
  %v738 = vadd.f32 %v737, %v674
  %v739 = vadd.f32 %v738, %v675
  %v740 = vadd.f32 %v739, %v676
  %v741 = vadd.f32 %v740, %v677
  %v742 = vadd.f32 %v741, %v678
  %v743 = vadd.f32 %v742, %v679
  %v744 = vadd.f32 %v743, %v680
  %v745 = vadd.f32 %v744, %v681
  %v746 = vadd.f32 %v745, %v682
  %v747 = vadd.f32 %v746, %v683
  %v748 = vadd.f32 %v747, %v684
  %v749 = vadd.f32 %v748, %v685
  %v750 = vadd.f32 %v749, %v686
  %v751 = vadd.f32 %v750, %v687
  %v752 = vadd.f32 %v751, %v688
  %v753 = vadd.f32 %v752, %v689
  %v754 = vadd.f32 %v753, %v690
  %v755 = vadd.f32 %v754, %v691
  %v756 = vadd.f32 %v755, %v692
  %v757 = vadd.f32 %v756, %v693
  %v758 = vadd.f32 %v757, %v694
  %v759 = vadd.f32 %v758, %v695
  %v760 = vadd.f32 %v759, %v696
  %v761 = vadd.f32 %v760, %v697
  %v762 = vadd.f32 %v761, %v698
  %v763 = vadd.f32 %v762, %v699
  %v764 = vadd.f32 %v763, %v700
  %v765 = vrot.slane %v764, 4
  %v766 = vadd.f32 %v764, %v765
  %v767 = vrot.slane %v766, 2
  %v768 = vadd.f32 %v766, %v767
  %v769 = vrot.slane %v768, 1
  %v770 = vadd.f32 %v768, %v769
  %v771 = vadd.f32 %v701, %v770
  %772 = vst [vmem:[%s3] sm:$0x1] %v771
  %v773 = vld [vmem:[%s4] sm:$0x1]
  %v774 = vmul.f32 %v637, %v637
  %v775 = vmul.f32 %v638, %v638
  %v776 = vmul.f32 %v639, %v639
  %v777 = vmul.f32 %v640, %v640
  %v778 = vmul.f32 %v641, %v641
  %v779 = vmul.f32 %v642, %v642
  %v780 = vmul.f32 %v643, %v643
  %v781 = vmul.f32 %v644, %v644
  %v782 = vmul.f32 %v645, %v645
  %v783 = vmul.f32 %v646, %v646
  %v784 = vmul.f32 %v647, %v647
  %v785 = vmul.f32 %v648, %v648
  %v786 = vmul.f32 %v649, %v649
  %v787 = vmul.f32 %v650, %v650
  %v788 = vmul.f32 %v651, %v651
  %v789 = vmul.f32 %v652, %v652
  %v790 = vmul.f32 %v653, %v653
  %v791 = vmul.f32 %v654, %v654
  %v792 = vmul.f32 %v655, %v655
  %v793 = vmul.f32 %v656, %v656
  %v794 = vmul.f32 %v657, %v657
  %v795 = vmul.f32 %v658, %v658
  %v796 = vmul.f32 %v659, %v659
  %v797 = vmul.f32 %v660, %v660
  %v798 = vmul.f32 %v661, %v661
  %v799 = vmul.f32 %v662, %v662
  %v800 = vmul.f32 %v663, %v663
  %v801 = vmul.f32 %v664, %v664
  %v802 = vmul.f32 %v665, %v665
  %v803 = vmul.f32 %v666, %v666
  %v804 = vmul.f32 %v667, %v667
  %v805 = vmul.f32 %v668, %v668
  %v806 = vmul.f32 %v669, %v669
  %v807 = vmul.f32 %v670, %v670
  %v808 = vmul.f32 %v671, %v671
  %v809 = vmul.f32 %v672, %v672
  %v810 = vmul.f32 %v673, %v673
  %v811 = vmul.f32 %v674, %v674
  %v812 = vmul.f32 %v675, %v675
  %v813 = vmul.f32 %v676, %v676
  %v814 = vmul.f32 %v677, %v677
  %v815 = vmul.f32 %v678, %v678
  %v816 = vmul.f32 %v679, %v679
  %v817 = vmul.f32 %v680, %v680
  %v818 = vmul.f32 %v681, %v681
  %v819 = vmul.f32 %v682, %v682
  %v820 = vmul.f32 %v683, %v683
  %v821 = vmul.f32 %v684, %v684
  %v822 = vmul.f32 %v685, %v685
  %v823 = vmul.f32 %v686, %v686
  %v824 = vmul.f32 %v687, %v687
  %v825 = vmul.f32 %v688, %v688
  %v826 = vmul.f32 %v689, %v689
  %v827 = vmul.f32 %v690, %v690
  %v828 = vmul.f32 %v691, %v691
  %v829 = vmul.f32 %v692, %v692
  %v830 = vmul.f32 %v693, %v693
  %v831 = vmul.f32 %v694, %v694
  %v832 = vmul.f32 %v695, %v695
  %v833 = vmul.f32 %v696, %v696
  %v834 = vmul.f32 %v697, %v697
  %v835 = vmul.f32 %v698, %v698
  %v836 = vmul.f32 %v699, %v699
  %v837 = vmul.f32 %v700, %v700
  %v838 = vadd.f32 %v774, %v775
  %v839 = vadd.f32 %v838, %v776
  %v840 = vadd.f32 %v839, %v777
  %v841 = vadd.f32 %v840, %v778
  %v842 = vadd.f32 %v841, %v779
  %v843 = vadd.f32 %v842, %v780
  %v844 = vadd.f32 %v843, %v781
  %v845 = vadd.f32 %v844, %v782
  %v846 = vadd.f32 %v845, %v783
  %v847 = vadd.f32 %v846, %v784
  %v848 = vadd.f32 %v847, %v785
  %v849 = vadd.f32 %v848, %v786
  %v850 = vadd.f32 %v849, %v787
  %v851 = vadd.f32 %v850, %v788
  %v852 = vadd.f32 %v851, %v789
  %v853 = vadd.f32 %v852, %v790
  %v854 = vadd.f32 %v853, %v791
  %v855 = vadd.f32 %v854, %v792
  %v856 = vadd.f32 %v855, %v793
  %v857 = vadd.f32 %v856, %v794
  %v858 = vadd.f32 %v857, %v795
  %v859 = vadd.f32 %v858, %v796
  %v860 = vadd.f32 %v859, %v797
  %v861 = vadd.f32 %v860, %v798
  %v862 = vadd.f32 %v861, %v799
  %v863 = vadd.f32 %v862, %v800
  %v864 = vadd.f32 %v863, %v801
  %v865 = vadd.f32 %v864, %v802
  %v866 = vadd.f32 %v865, %v803
  %v867 = vadd.f32 %v866, %v804
  %v868 = vadd.f32 %v867, %v805
  %v869 = vadd.f32 %v868, %v806
  %v870 = vadd.f32 %v869, %v807
  %v871 = vadd.f32 %v870, %v808
  %v872 = vadd.f32 %v871, %v809
  %v873 = vadd.f32 %v872, %v810
  %v874 = vadd.f32 %v873, %v811
  %v875 = vadd.f32 %v874, %v812
  %v876 = vadd.f32 %v875, %v813
  %v877 = vadd.f32 %v876, %v814
  %v878 = vadd.f32 %v877, %v815
  %v879 = vadd.f32 %v878, %v816
  %v880 = vadd.f32 %v879, %v817
  %v881 = vadd.f32 %v880, %v818
  %v882 = vadd.f32 %v881, %v819
  %v883 = vadd.f32 %v882, %v820
  %v884 = vadd.f32 %v883, %v821
  %v885 = vadd.f32 %v884, %v822
  %v886 = vadd.f32 %v885, %v823
  %v887 = vadd.f32 %v886, %v824
  %v888 = vadd.f32 %v887, %v825
  %v889 = vadd.f32 %v888, %v826
  %v890 = vadd.f32 %v889, %v827
  %v891 = vadd.f32 %v890, %v828
  %v892 = vadd.f32 %v891, %v829
  %v893 = vadd.f32 %v892, %v830
  %v894 = vadd.f32 %v893, %v831
  %v895 = vadd.f32 %v894, %v832
  %v896 = vadd.f32 %v895, %v833
  %v897 = vadd.f32 %v896, %v834
  %v898 = vadd.f32 %v897, %v835
  %v899 = vadd.f32 %v898, %v836
  %v900 = vadd.f32 %v899, %v837
  %v901 = vrot.slane %v900, 4
  %v902 = vadd.f32 %v900, %v901
  %v903 = vrot.slane %v902, 2
  %v904 = vadd.f32 %v902, %v903
  %v905 = vrot.slane %v904, 1
  %v906 = vadd.f32 %v904, %v905
  %v907 = vadd.f32 %v773, %v906
  %908 = vst [vmem:[%s4] sm:$0x1] %v907
  // Predicated region
  $region14: #{residual_block_forward.8} parent=0 // pred_check
    _
  $region15: #{residual_block_forward.8} parent=0 // pred_check_branch
    %910 = sbr.rel (0) target = $region17
  $region16: #{residual_block_forward.8} parent=0 // pred_region
    _
  $region17: #{residual_block_forward.8} parent=0 // pred_fallthru
    _
  // Predicated region
  $region18: #{residual_block_forward.8} parent=0 // pred_check
    _
  $region19: #{residual_block_forward.8} parent=0 // pred_check_branch
    %912 = sbr.rel (0) target = $region21
  $region20: #{residual_block_forward.8} parent=0 // pred_region
    _
  $region21: #{residual_block_forward.8} parent=0 // pred_fallthru
    _
  // Predicated region
  $region22: #{residual_block_forward.8} parent=0 // pred_check
    _
  $region23: #{residual_block_forward.8} parent=0 // pred_check_branch
    %914 = sbr.rel (0) target = $region25
  $region24: #{residual_block_forward.8} parent=0 // pred_region
    _
  $region25: #{residual_block_forward.8} parent=0 // pred_fallthru
    _
  // Predicated region
  $region26: #{residual_block_forward.8} parent=0 // pred_check
    _
  $region27: #{residual_block_forward.8} parent=0 // pred_check_branch
    %916 = sbr.rel (0) target = $region29
  $region28: #{residual_block_forward.8} parent=0 // pred_region
    _
  $region29: #{residual_block_forward.8} parent=0 // pred_fallthru
    _
  // Predicated region
  $region30: #{residual_block_forward.8} parent=0 // pred_check
    _
  $region31: #{residual_block_forward.8} parent=0 // pred_check_branch
    %918 = sbr.rel (0) target = $region33
  $region32: #{residual_block_forward.8} parent=0 // pred_region
    _
  $region33: #{residual_block_forward.8} parent=0 // pred_fallthru
    _
  // Predicated region
  $region34: #{residual_block_forward.8} parent=0 // pred_check
    _
  $region35: #{residual_block_forward.8} parent=0 // pred_check_branch
    %920 = sbr.rel (0) target = $region37
  $region36: #{residual_block_forward.8} parent=0 // pred_region
    _
  $region37: #{residual_block_forward.8} parent=0 // pred_fallthru
    _

// kernel: residual_block_forward.11
$region0: #{residual_block_forward.11}
  #allocation0 [shape = 'u32[]', space=smem, size = 0x4, offset = 0x4, fixed_abs, tag = 'smem constant byte address 0x4 - core index']
  #allocation1 [shape = 'u32[72,128]{1,0:T(1,128)}', space=vmem, size = 0x9000, scoped, tag = 'internal scratch']
  %s0 = inlined_call_operand.vmem [shape: bf16[512,128], index: 0, kind: input, shape index: {}]
  %s1 = inlined_call_operand.vmem [shape: f32[1,128], index: 1, kind: input, shape index: {}]
  %s2 = inlined_call_operand.vmem [shape: f32[1,128], index: 2, kind: input, shape index: {}]
  %s3 = inlined_call_operand.vmem [shape: f32[512,128], index: 3, kind: input, shape index: {}]
  %s4 = inlined_call_operand.vmem [shape: f32[512,128], index: 4, kind: output, shape index: {}]
  %s5 = sld [smem:[#allocation0]]
  $region26: #{residual_block_forward.11} parent=0
    _
  %s7 = ssub.s32 1, %s5
  %s8 = scalar_select 0, %s7, %s5
  // Predicated region
  $region2: #{residual_block_forward.11} parent=0 // pred_check
    _
  $region3: #{residual_block_forward.11} parent=0 // pred_check_branch
    %10 = sbr.rel (0) target = $region5
  $region4: #{residual_block_forward.11} parent=0 // pred_region
    _
  $region5: #{residual_block_forward.11} parent=0 // pred_fallthru
    _
  // Predicated region
  $region6: #{residual_block_forward.11} parent=0 // pred_check
    _
  $region7: #{residual_block_forward.11} parent=0 // pred_check_branch
    %12 = sbr.rel (0) target = $region9
  $region8: #{residual_block_forward.11} parent=0 // pred_region
    _
  $region9: #{residual_block_forward.11} parent=0 // pred_fallthru
    _
  // Predicated region
  $region10: #{residual_block_forward.11} parent=0 // pred_check
    _
  $region11: #{residual_block_forward.11} parent=0 // pred_check_branch
    %14 = sbr.rel (0) target = $region13
  $region12: #{residual_block_forward.11} parent=0 // pred_region
    _
  $region13: #{residual_block_forward.11} parent=0 // pred_fallthru
    _
  // Predicated region
  $region14: #{residual_block_forward.11} parent=0 // pred_check
    _
  $region15: #{residual_block_forward.11} parent=0 // pred_check_branch
    %16 = sbr.rel (0) target = $region17
  $region16: #{residual_block_forward.11} parent=0 // pred_region
    _
  $region17: #{residual_block_forward.11} parent=0 // pred_fallthru
    _
  %v17 = vld [vmem:[%s0] sm:$0xf]
  %v18 = vld [vmem:[%s0 + $0x4] sm:$0xf]
  %v19 = vld [vmem:[%s0 + $0x8] sm:$0xf]
  %v20 = vld [vmem:[%s0 + $0xc] sm:$0xf]
  %v21 = vld [vmem:[%s0 + $0x10] sm:$0xf]
  %v22 = vld [vmem:[%s0 + $0x14] sm:$0xf]
  %v23 = vld [vmem:[%s0 + $0x18] sm:$0xf]
  %v24 = vld [vmem:[%s0 + $0x1c] sm:$0xf]
  %v25 = vld [vmem:[%s0 + $0x20] sm:$0xf]
  %v26 = vld [vmem:[%s0 + $0x24] sm:$0xf]
  %v27 = vld [vmem:[%s0 + $0x28] sm:$0xf]
  %v28 = vld [vmem:[%s0 + $0x2c] sm:$0xf]
  %v29 = vld [vmem:[%s0 + $0x30] sm:$0xf]
  %v30 = vld [vmem:[%s0 + $0x34] sm:$0xf]
  %v31 = vld [vmem:[%s0 + $0x38] sm:$0xf]
  %v32 = vld [vmem:[%s0 + $0x3c] sm:$0xf]
  %v33 = vld [vmem:[%s0 + $0x40] sm:$0xf]
  %v34 = vld [vmem:[%s0 + $0x44] sm:$0xf]
  %v35 = vld [vmem:[%s0 + $0x48] sm:$0xf]
  %v36 = vld [vmem:[%s0 + $0x4c] sm:$0xf]
  %v37 = vld [vmem:[%s0 + $0x50] sm:$0xf]
  %v38 = vld [vmem:[%s0 + $0x54] sm:$0xf]
  %v39 = vld [vmem:[%s0 + $0x58] sm:$0xf]
  %v40 = vld [vmem:[%s0 + $0x5c] sm:$0xf]
  %v41 = vld [vmem:[%s0 + $0x60] sm:$0xf]
  %v42 = vld [vmem:[%s0 + $0x64] sm:$0xf]
  %v43 = vld [vmem:[%s0 + $0x68] sm:$0xf]
  %v44 = vld [vmem:[%s0 + $0x6c] sm:$0xf]
  %v45 = vld [vmem:[%s0 + $0x70] sm:$0xf]
  %v46 = vld [vmem:[%s0 + $0x74] sm:$0xf]
  %v47 = vld [vmem:[%s0 + $0x78] sm:$0xf]
  %v48 = vld [vmem:[%s0 + $0x7c] sm:$0xf]
  %v49 = vld [vmem:[%s0 + $0x80] sm:$0xf]
  %v50 = vld [vmem:[%s0 + $0x84] sm:$0xf]
  %v51 = vld [vmem:[%s0 + $0x88] sm:$0xf]
  %v52 = vld [vmem:[%s0 + $0x8c] sm:$0xf]
  %v53 = vld [vmem:[%s0 + $0x90] sm:$0xf]
  %v54 = vld [vmem:[%s0 + $0x94] sm:$0xf]
  %v55 = vld [vmem:[%s0 + $0x98] sm:$0xf]
  %v56 = vld [vmem:[%s0 + $0x9c] sm:$0xf]
  %v57 = vld [vmem:[%s0 + $0xa0] sm:$0xf]
  %v58 = vld [vmem:[%s0 + $0xa4] sm:$0xf]
  %v59 = vld [vmem:[%s0 + $0xa8] sm:$0xf]
  %v60 = vld [vmem:[%s0 + $0xac] sm:$0xf]
  %v61 = vld [vmem:[%s0 + $0xb0] sm:$0xf]
  %v62 = vld [vmem:[%s0 + $0xb4] sm:$0xf]
  %v63 = vld [vmem:[%s0 + $0xb8] sm:$0xf]
  %v64 = vld [vmem:[%s0 + $0xbc] sm:$0xf]
  %v65 = vld [vmem:[%s0 + $0xc0] sm:$0xf]
  %v66 = vld [vmem:[%s0 + $0xc4] sm:$0xf]
  %v67 = vld [vmem:[%s0 + $0xc8] sm:$0xf]
  %v68 = vld [vmem:[%s0 + $0xcc] sm:$0xf]
  %v69 = vld [vmem:[%s0 + $0xd0] sm:$0xf]
  %v70 = vld [vmem:[%s0 + $0xd4] sm:$0xf]
  %v71 = vld [vmem:[%s0 + $0xd8] sm:$0xf]
  %v72 = vld [vmem:[%s0 + $0xdc] sm:$0xf]
  %v73 = vld [vmem:[%s0 + $0xe0] sm:$0xf]
  %v74 = vld [vmem:[%s0 + $0xe4] sm:$0xf]
  %v75 = vld [vmem:[%s0 + $0xe8] sm:$0xf]
  %v76 = vld [vmem:[%s0 + $0xec] sm:$0xf]
  %v77 = vld [vmem:[%s0 + $0xf0] sm:$0xf]
  %v78 = vld [vmem:[%s0 + $0xf4] sm:$0xf]
  %v79 = vld [vmem:[%s0 + $0xf8] sm:$0xf]
  %v80 = vld [vmem:[%s0 + $0xfc] sm:$0xf]
  %v81 = vunpack.c.l.bf16 %v17
  %v82 = vunpack.c.l.bf16 %v18
  %v83 = vunpack.c.l.bf16 %v19
  %v84 = vunpack.c.l.bf16 %v20
  %v85 = vunpack.c.l.bf16 %v21
  %v86 = vunpack.c.l.bf16 %v22
  %v87 = vunpack.c.l.bf16 %v23
  %v88 = vunpack.c.l.bf16 %v24
  %v89 = vunpack.c.l.bf16 %v25
  %v90 = vunpack.c.l.bf16 %v26
  %v91 = vunpack.c.l.bf16 %v27
  %v92 = vunpack.c.l.bf16 %v28
  %v93 = vunpack.c.l.bf16 %v29
  %v94 = vunpack.c.l.bf16 %v30
  %v95 = vunpack.c.l.bf16 %v31
  %v96 = vunpack.c.l.bf16 %v32
  %v97 = vunpack.c.l.bf16 %v33
  %v98 = vunpack.c.l.bf16 %v34
  %v99 = vunpack.c.l.bf16 %v35
  %v100 = vunpack.c.l.bf16 %v36
  %v101 = vunpack.c.l.bf16 %v37
  %v102 = vunpack.c.l.bf16 %v38
  %v103 = vunpack.c.l.bf16 %v39
  %v104 = vunpack.c.l.bf16 %v40
  %v105 = vunpack.c.l.bf16 %v41
  %v106 = vunpack.c.l.bf16 %v42
  %v107 = vunpack.c.l.bf16 %v43
  %v108 = vunpack.c.l.bf16 %v44
  %v109 = vunpack.c.l.bf16 %v45
  %v110 = vunpack.c.l.bf16 %v46
  %v111 = vunpack.c.l.bf16 %v47
  %v112 = vunpack.c.l.bf16 %v48
  %v113 = vunpack.c.l.bf16 %v49
  %v114 = vunpack.c.l.bf16 %v50
  %v115 = vunpack.c.l.bf16 %v51
  %v116 = vunpack.c.l.bf16 %v52
  %v117 = vunpack.c.l.bf16 %v53
  %v118 = vunpack.c.l.bf16 %v54
  %v119 = vunpack.c.l.bf16 %v55
  %v120 = vunpack.c.l.bf16 %v56
  %v121 = vunpack.c.l.bf16 %v57
  %v122 = vunpack.c.l.bf16 %v58
  %v123 = vunpack.c.l.bf16 %v59
  %v124 = vunpack.c.l.bf16 %v60
  %v125 = vunpack.c.l.bf16 %v61
  %v126 = vunpack.c.l.bf16 %v62
  %v127 = vunpack.c.l.bf16 %v63
  %v128 = vunpack.c.l.bf16 %v64
  %v129 = vunpack.c.l.bf16 %v65
  %v130 = vunpack.c.l.bf16 %v66
  %v131 = vunpack.c.l.bf16 %v67
  %v132 = vunpack.c.l.bf16 %v68
  %v133 = vunpack.c.l.bf16 %v69
  %v134 = vunpack.c.l.bf16 %v70
  %v135 = vunpack.c.l.bf16 %v71
  %v136 = vunpack.c.l.bf16 %v72
  %v137 = vunpack.c.l.bf16 %v73
  %v138 = vunpack.c.l.bf16 %v74
  %v139 = vunpack.c.l.bf16 %v75
  %v140 = vunpack.c.l.bf16 %v76
  %v141 = vunpack.c.l.bf16 %v77
  %v142 = vunpack.c.l.bf16 %v78
  %v143 = vunpack.c.l.bf16 %v79
  %v144 = vunpack.c.l.bf16 %v80
  %v145 = vld [vmem:[%s1] sm:$0x1]
  %v147 = vperm.slane %v145, 0
  %v149 = vmul.f32 %v81, %v147
  %v150 = vmul.f32 %v82, %v147
  %v151 = vmul.f32 %v83, %v147
  %v152 = vmul.f32 %v84, %v147
  %v153 = vmul.f32 %v85, %v147
  %v154 = vmul.f32 %v86, %v147
  %v155 = vmul.f32 %v87, %v147
  %v156 = vmul.f32 %v88, %v147
  %v157 = vmul.f32 %v89, %v147
  %v158 = vmul.f32 %v90, %v147
  %v159 = vmul.f32 %v91, %v147
  %v160 = vmul.f32 %v92, %v147
  %v161 = vmul.f32 %v93, %v147
  %v162 = vmul.f32 %v94, %v147
  %v163 = vmul.f32 %v95, %v147
  %v164 = vmul.f32 %v96, %v147
  %v165 = vmul.f32 %v97, %v147
  %v166 = vmul.f32 %v98, %v147
  %v167 = vmul.f32 %v99, %v147
  %v168 = vmul.f32 %v100, %v147
  %v169 = vmul.f32 %v101, %v147
  %v170 = vmul.f32 %v102, %v147
  %v171 = vmul.f32 %v103, %v147
  %v172 = vmul.f32 %v104, %v147
  %v173 = vmul.f32 %v105, %v147
  %v174 = vmul.f32 %v106, %v147
  %v175 = vmul.f32 %v107, %v147
  %v176 = vmul.f32 %v108, %v147
  %v177 = vmul.f32 %v109, %v147
  %v178 = vmul.f32 %v110, %v147
  %v179 = vmul.f32 %v111, %v147
  %v180 = vmul.f32 %v112, %v147
  %v181 = vmul.f32 %v113, %v147
  %v182 = vmul.f32 %v114, %v147
  %v183 = vmul.f32 %v115, %v147
  %v184 = vmul.f32 %v116, %v147
  %v185 = vmul.f32 %v117, %v147
  %v186 = vmul.f32 %v118, %v147
  %v187 = vmul.f32 %v119, %v147
  %v188 = vmul.f32 %v120, %v147
  %v189 = vmul.f32 %v121, %v147
  %v190 = vmul.f32 %v122, %v147
  %v191 = vmul.f32 %v123, %v147
  %v192 = vmul.f32 %v124, %v147
  %v193 = vmul.f32 %v125, %v147
  %v194 = vmul.f32 %v126, %v147
  %v195 = vmul.f32 %v127, %v147
  %v196 = vmul.f32 %v128, %v147
  %v197 = vmul.f32 %v129, %v147
  %v198 = vmul.f32 %v130, %v147
  %v199 = vmul.f32 %v131, %v147
  %v200 = vmul.f32 %v132, %v147
  %v201 = vmul.f32 %v133, %v147
  %v202 = vmul.f32 %v134, %v147
  %v203 = vmul.f32 %v135, %v147
  %v204 = vmul.f32 %v136, %v147
  %v205 = vmul.f32 %v137, %v147
  %v206 = vmul.f32 %v138, %v147
  %v207 = vmul.f32 %v139, %v147
  %v208 = vmul.f32 %v140, %v147
  %v209 = vmul.f32 %v141, %v147
  %v210 = vmul.f32 %v142, %v147
  %v211 = vmul.f32 %v143, %v147
  %v212 = vmul.f32 %v144, %v147
  %v213 = vld [vmem:[%s2] sm:$0x1]
  %v215 = vperm.slane %v213, 0
  %v217 = vadd.f32 %v149, %v215
  %v218 = vadd.f32 %v150, %v215
  %v219 = vadd.f32 %v151, %v215
  %v220 = vadd.f32 %v152, %v215
  %v221 = vadd.f32 %v153, %v215
  %v222 = vadd.f32 %v154, %v215
  %v223 = vadd.f32 %v155, %v215
  %v224 = vadd.f32 %v156, %v215
  %v225 = vadd.f32 %v157, %v215
  %v226 = vadd.f32 %v158, %v215
  %v227 = vadd.f32 %v159, %v215
  %v228 = vadd.f32 %v160, %v215
  %v229 = vadd.f32 %v161, %v215
  %v230 = vadd.f32 %v162, %v215
  %v231 = vadd.f32 %v163, %v215
  %v232 = vadd.f32 %v164, %v215
  %v233 = vadd.f32 %v165, %v215
  %v234 = vadd.f32 %v166, %v215
  %v235 = vadd.f32 %v167, %v215
  %v236 = vadd.f32 %v168, %v215
  %v237 = vadd.f32 %v169, %v215
  %v238 = vadd.f32 %v170, %v215
  %v239 = vadd.f32 %v171, %v215
  %v240 = vadd.f32 %v172, %v215
  %v241 = vadd.f32 %v173, %v215
  %v242 = vadd.f32 %v174, %v215
  %v243 = vadd.f32 %v175, %v215
  %v244 = vadd.f32 %v176, %v215
  %v245 = vadd.f32 %v177, %v215
  %v246 = vadd.f32 %v178, %v215
  %v247 = vadd.f32 %v179, %v215
  %v248 = vadd.f32 %v180, %v215
  %v249 = vadd.f32 %v181, %v215
  %v250 = vadd.f32 %v182, %v215
  %v251 = vadd.f32 %v183, %v215
  %v252 = vadd.f32 %v184, %v215
  %v253 = vadd.f32 %v185, %v215
  %v254 = vadd.f32 %v186, %v215
  %v255 = vadd.f32 %v187, %v215
  %v256 = vadd.f32 %v188, %v215
  %v257 = vadd.f32 %v189, %v215
  %v258 = vadd.f32 %v190, %v215
  %v259 = vadd.f32 %v191, %v215
  %v260 = vadd.f32 %v192, %v215
  %v261 = vadd.f32 %v193, %v215
  %v262 = vadd.f32 %v194, %v215
  %v263 = vadd.f32 %v195, %v215
  %v264 = vadd.f32 %v196, %v215
  %v265 = vadd.f32 %v197, %v215
  %v266 = vadd.f32 %v198, %v215
  %v267 = vadd.f32 %v199, %v215
  %v268 = vadd.f32 %v200, %v215
  %v269 = vadd.f32 %v201, %v215
  %v270 = vadd.f32 %v202, %v215
  %v271 = vadd.f32 %v203, %v215
  %v272 = vadd.f32 %v204, %v215
  %v273 = vadd.f32 %v205, %v215
  %v274 = vadd.f32 %v206, %v215
  %v275 = vadd.f32 %v207, %v215
  %v276 = vadd.f32 %v208, %v215
  %v277 = vadd.f32 %v209, %v215
  %v278 = vadd.f32 %v210, %v215
  %v279 = vadd.f32 %v211, %v215
  %v280 = vadd.f32 %v212, %v215
  %v281 = vld [vmem:[%s3] sm:$0xff]
  %v282 = vld [vmem:[%s3 + $0x8] sm:$0xff]
  %v283 = vld [vmem:[%s3 + $0x10] sm:$0xff]
  %v284 = vld [vmem:[%s3 + $0x18] sm:$0xff]
  %v285 = vld [vmem:[%s3 + $0x20] sm:$0xff]
  %v286 = vld [vmem:[%s3 + $0x28] sm:$0xff]
  %v287 = vld [vmem:[%s3 + $0x30] sm:$0xff]
  %v288 = vld [vmem:[%s3 + $0x38] sm:$0xff]
  %v289 = vld [vmem:[%s3 + $0x40] sm:$0xff]
  %v290 = vld [vmem:[%s3 + $0x48] sm:$0xff]
  %v291 = vld [vmem:[%s3 + $0x50] sm:$0xff]
  %v292 = vld [vmem:[%s3 + $0x58] sm:$0xff]
  %v293 = vld [vmem:[%s3 + $0x60] sm:$0xff]
  %v294 = vld [vmem:[%s3 + $0x68] sm:$0xff]
  %v295 = vld [vmem:[%s3 + $0x70] sm:$0xff]
  %v296 = vld [vmem:[%s3 + $0x78] sm:$0xff]
  %v297 = vld [vmem:[%s3 + $0x80] sm:$0xff]
  %v298 = vld [vmem:[%s3 + $0x88] sm:$0xff]
  %v299 = vld [vmem:[%s3 + $0x90] sm:$0xff]
  %v300 = vld [vmem:[%s3 + $0x98] sm:$0xff]
  %v301 = vld [vmem:[%s3 + $0xa0] sm:$0xff]
  %v302 = vld [vmem:[%s3 + $0xa8] sm:$0xff]
  %v303 = vld [vmem:[%s3 + $0xb0] sm:$0xff]
  %v304 = vld [vmem:[%s3 + $0xb8] sm:$0xff]
  %v305 = vld [vmem:[%s3 + $0xc0] sm:$0xff]
  %v306 = vld [vmem:[%s3 + $0xc8] sm:$0xff]
  %v307 = vld [vmem:[%s3 + $0xd0] sm:$0xff]
  %v308 = vld [vmem:[%s3 + $0xd8] sm:$0xff]
  %v309 = vld [vmem:[%s3 + $0xe0] sm:$0xff]
  %v310 = vld [vmem:[%s3 + $0xe8] sm:$0xff]
  %v311 = vld [vmem:[%s3 + $0xf0] sm:$0xff]
  %v312 = vld [vmem:[%s3 + $0xf8] sm:$0xff]
  %v313 = vld [vmem:[%s3 + $0x100] sm:$0xff]
  %v314 = vld [vmem:[%s3 + $0x108] sm:$0xff]
  %v315 = vld [vmem:[%s3 + $0x110] sm:$0xff]
  %v316 = vld [vmem:[%s3 + $0x118] sm:$0xff]
  %v317 = vld [vmem:[%s3 + $0x120] sm:$0xff]
  %v318 = vld [vmem:[%s3 + $0x128] sm:$0xff]
  %v319 = vld [vmem:[%s3 + $0x130] sm:$0xff]
  %v320 = vld [vmem:[%s3 + $0x138] sm:$0xff]
  %v321 = vld [vmem:[%s3 + $0x140] sm:$0xff]
  %v322 = vld [vmem:[%s3 + $0x148] sm:$0xff]
  %v323 = vld [vmem:[%s3 + $0x150] sm:$0xff]
  %v324 = vld [vmem:[%s3 + $0x158] sm:$0xff]
  %v325 = vld [vmem:[%s3 + $0x160] sm:$0xff]
  %v326 = vld [vmem:[%s3 + $0x168] sm:$0xff]
  %v327 = vld [vmem:[%s3 + $0x170] sm:$0xff]
  %v328 = vld [vmem:[%s3 + $0x178] sm:$0xff]
  %v329 = vld [vmem:[%s3 + $0x180] sm:$0xff]
  %v330 = vld [vmem:[%s3 + $0x188] sm:$0xff]
  %v331 = vld [vmem:[%s3 + $0x190] sm:$0xff]
  %v332 = vld [vmem:[%s3 + $0x198] sm:$0xff]
  %v333 = vld [vmem:[%s3 + $0x1a0] sm:$0xff]
  %v334 = vld [vmem:[%s3 + $0x1a8] sm:$0xff]
  %v335 = vld [vmem:[%s3 + $0x1b0] sm:$0xff]
  %v336 = vld [vmem:[%s3 + $0x1b8] sm:$0xff]
  %v337 = vld [vmem:[%s3 + $0x1c0] sm:$0xff]
  %v338 = vld [vmem:[%s3 + $0x1c8] sm:$0xff]
  %v339 = vld [vmem:[%s3 + $0x1d0] sm:$0xff]
  %v340 = vld [vmem:[%s3 + $0x1d8] sm:$0xff]
  %v341 = vld [vmem:[%s3 + $0x1e0] sm:$0xff]
  %v342 = vld [vmem:[%s3 + $0x1e8] sm:$0xff]
  %v343 = vld [vmem:[%s3 + $0x1f0] sm:$0xff]
  %v344 = vld [vmem:[%s3 + $0x1f8] sm:$0xff]
  %v345 = vadd.f32 %v217, %v281
  %v346 = vadd.f32 %v218, %v282
  %v347 = vadd.f32 %v219, %v283
  %v348 = vadd.f32 %v220, %v284
  %v349 = vadd.f32 %v221, %v285
  %v350 = vadd.f32 %v222, %v286
  %v351 = vadd.f32 %v223, %v287
  %v352 = vadd.f32 %v224, %v288
  %v353 = vadd.f32 %v225, %v289
  %v354 = vadd.f32 %v226, %v290
  %v355 = vadd.f32 %v227, %v291
  %v356 = vadd.f32 %v228, %v292
  %v357 = vadd.f32 %v229, %v293
  %v358 = vadd.f32 %v230, %v294
  %v359 = vadd.f32 %v231, %v295
  %v360 = vadd.f32 %v232, %v296
  %v361 = vadd.f32 %v233, %v297
  %v362 = vadd.f32 %v234, %v298
  %v363 = vadd.f32 %v235, %v299
  %v364 = vadd.f32 %v236, %v300
  %v365 = vadd.f32 %v237, %v301
  %v366 = vadd.f32 %v238, %v302
  %v367 = vadd.f32 %v239, %v303
  %v368 = vadd.f32 %v240, %v304
  %v369 = vadd.f32 %v241, %v305
  %v370 = vadd.f32 %v242, %v306
  %v371 = vadd.f32 %v243, %v307
  %v372 = vadd.f32 %v244, %v308
  %v373 = vadd.f32 %v245, %v309
  %v374 = vadd.f32 %v246, %v310
  %v375 = vadd.f32 %v247, %v311
  %v376 = vadd.f32 %v248, %v312
  %v377 = vadd.f32 %v249, %v313
  %v378 = vadd.f32 %v250, %v314
  %v379 = vadd.f32 %v251, %v315
  %v380 = vadd.f32 %v252, %v316
  %v381 = vadd.f32 %v253, %v317
  %v382 = vadd.f32 %v254, %v318
  %v383 = vadd.f32 %v255, %v319
  %v384 = vadd.f32 %v256, %v320
  %v385 = vadd.f32 %v257, %v321
  %v386 = vadd.f32 %v258, %v322
  %v387 = vadd.f32 %v259, %v323
  %v388 = vadd.f32 %v260, %v324
  %v389 = vadd.f32 %v261, %v325
  %v390 = vadd.f32 %v262, %v326
  %v391 = vadd.f32 %v263, %v327
  %v392 = vadd.f32 %v264, %v328
  %v393 = vadd.f32 %v265, %v329
  %v394 = vadd.f32 %v266, %v330
  %v395 = vadd.f32 %v267, %v331
  %v396 = vadd.f32 %v268, %v332
  %v397 = vadd.f32 %v269, %v333
  %v398 = vadd.f32 %v270, %v334
  %v399 = vadd.f32 %v271, %v335
  %v400 = vadd.f32 %v272, %v336
  %v401 = vadd.f32 %v273, %v337
  %v402 = vadd.f32 %v274, %v338
  %v403 = vadd.f32 %v275, %v339
  %v404 = vadd.f32 %v276, %v340
  %v405 = vadd.f32 %v277, %v341
  %v406 = vadd.f32 %v278, %v342
  %v407 = vadd.f32 %v279, %v343
  %v408 = vadd.f32 %v280, %v344
  %v409 = vmax.f32 %v345, 0.0
  %v410 = vmax.f32 %v346, 0.0
  %v411 = vmax.f32 %v347, 0.0
  %v412 = vmax.f32 %v348, 0.0
  %v413 = vmax.f32 %v349, 0.0
  %v414 = vmax.f32 %v350, 0.0
  %v415 = vmax.f32 %v351, 0.0
  %v416 = vmax.f32 %v352, 0.0
  %v417 = vmax.f32 %v353, 0.0
  %v418 = vmax.f32 %v354, 0.0
  %v419 = vmax.f32 %v355, 0.0
  %v420 = vmax.f32 %v356, 0.0
  %v421 = vmax.f32 %v357, 0.0
  %v422 = vmax.f32 %v358, 0.0
  %v423 = vmax.f32 %v359, 0.0
  %v424 = vmax.f32 %v360, 0.0
  %v425 = vmax.f32 %v361, 0.0
  %v426 = vmax.f32 %v362, 0.0
  %v427 = vmax.f32 %v363, 0.0
  %v428 = vmax.f32 %v364, 0.0
  %v429 = vmax.f32 %v365, 0.0
  %v430 = vmax.f32 %v366, 0.0
  %v431 = vmax.f32 %v367, 0.0
  %v432 = vmax.f32 %v368, 0.0
  %v433 = vmax.f32 %v369, 0.0
  %v434 = vmax.f32 %v370, 0.0
  %v435 = vmax.f32 %v371, 0.0
  %v436 = vmax.f32 %v372, 0.0
  %v437 = vmax.f32 %v373, 0.0
  %v438 = vmax.f32 %v374, 0.0
  %v439 = vmax.f32 %v375, 0.0
  %v440 = vmax.f32 %v376, 0.0
  %v441 = vmax.f32 %v377, 0.0
  %v442 = vmax.f32 %v378, 0.0
  %v443 = vmax.f32 %v379, 0.0
  %v444 = vmax.f32 %v380, 0.0
  %v445 = vmax.f32 %v381, 0.0
  %v446 = vmax.f32 %v382, 0.0
  %v447 = vmax.f32 %v383, 0.0
  %v448 = vmax.f32 %v384, 0.0
  %v449 = vmax.f32 %v385, 0.0
  %v450 = vmax.f32 %v386, 0.0
  %v451 = vmax.f32 %v387, 0.0
  %v452 = vmax.f32 %v388, 0.0
  %v453 = vmax.f32 %v389, 0.0
  %v454 = vmax.f32 %v390, 0.0
  %v455 = vmax.f32 %v391, 0.0
  %v456 = vmax.f32 %v392, 0.0
  %v457 = vmax.f32 %v393, 0.0
  %v458 = vmax.f32 %v394, 0.0
  %v459 = vmax.f32 %v395, 0.0
  %v460 = vmax.f32 %v396, 0.0
  %v461 = vmax.f32 %v397, 0.0
  %v462 = vmax.f32 %v398, 0.0
  %v463 = vmax.f32 %v399, 0.0
  %v464 = vmax.f32 %v400, 0.0
  %v465 = vmax.f32 %v401, 0.0
  %v466 = vmax.f32 %v402, 0.0
  %v467 = vmax.f32 %v403, 0.0
  %v468 = vmax.f32 %v404, 0.0
  %v469 = vmax.f32 %v405, 0.0
  %v470 = vmax.f32 %v406, 0.0
  %v471 = vmax.f32 %v407, 0.0
  %v472 = vmax.f32 %v408, 0.0
  %473 = vst [vmem:[%s4] sm:$0xff] %v409
  %474 = vst [vmem:[%s4 + $0x8] sm:$0xff] %v410
  %475 = vst [vmem:[%s4 + $0x10] sm:$0xff] %v411
  %476 = vst [vmem:[%s4 + $0x18] sm:$0xff] %v412
  %477 = vst [vmem:[%s4 + $0x20] sm:$0xff] %v413
  %478 = vst [vmem:[%s4 + $0x28] sm:$0xff] %v414
  %479 = vst [vmem:[%s4 + $0x30] sm:$0xff] %v415
  %480 = vst [vmem:[%s4 + $0x38] sm:$0xff] %v416
  %481 = vst [vmem:[%s4 + $0x40] sm:$0xff] %v417
  %482 = vst [vmem:[%s4 + $0x48] sm:$0xff] %v418
  %483 = vst [vmem:[%s4 + $0x50] sm:$0xff] %v419
  %484 = vst [vmem:[%s4 + $0x58] sm:$0xff] %v420
  %485 = vst [vmem:[%s4 + $0x60] sm:$0xff] %v421
  %486 = vst [vmem:[%s4 + $0x68] sm:$0xff] %v422
  %487 = vst [vmem:[%s4 + $0x70] sm:$0xff] %v423
  %488 = vst [vmem:[%s4 + $0x78] sm:$0xff] %v424
  %489 = vst [vmem:[%s4 + $0x80] sm:$0xff] %v425
  %490 = vst [vmem:[%s4 + $0x88] sm:$0xff] %v426
  %491 = vst [vmem:[%s4 + $0x90] sm:$0xff] %v427
  %492 = vst [vmem:[%s4 + $0x98] sm:$0xff] %v428
  %493 = vst [vmem:[%s4 + $0xa0] sm:$0xff] %v429
  %494 = vst [vmem:[%s4 + $0xa8] sm:$0xff] %v430
  %495 = vst [vmem:[%s4 + $0xb0] sm:$0xff] %v431
  %496 = vst [vmem:[%s4 + $0xb8] sm:$0xff] %v432
  %497 = vst [vmem:[%s4 + $0xc0] sm:$0xff] %v433
  %498 = vst [vmem:[%s4 + $0xc8] sm:$0xff] %v434
  %499 = vst [vmem:[%s4 + $0xd0] sm:$0xff] %v435
  %500 = vst [vmem:[%s4 + $0xd8] sm:$0xff] %v436
  %501 = vst [vmem:[%s4 + $0xe0] sm:$0xff] %v437
  %502 = vst [vmem:[%s4 + $0xe8] sm:$0xff] %v438
  %503 = vst [vmem:[%s4 + $0xf0] sm:$0xff] %v439
  %504 = vst [vmem:[%s4 + $0xf8] sm:$0xff] %v440
  %505 = vst [vmem:[%s4 + $0x100] sm:$0xff] %v441
  %506 = vst [vmem:[%s4 + $0x108] sm:$0xff] %v442
  %507 = vst [vmem:[%s4 + $0x110] sm:$0xff] %v443
  %508 = vst [vmem:[%s4 + $0x118] sm:$0xff] %v444
  %509 = vst [vmem:[%s4 + $0x120] sm:$0xff] %v445
  %510 = vst [vmem:[%s4 + $0x128] sm:$0xff] %v446
  %511 = vst [vmem:[%s4 + $0x130] sm:$0xff] %v447
  %512 = vst [vmem:[%s4 + $0x138] sm:$0xff] %v448
  %513 = vst [vmem:[%s4 + $0x140] sm:$0xff] %v449
  %514 = vst [vmem:[%s4 + $0x148] sm:$0xff] %v450
  %515 = vst [vmem:[%s4 + $0x150] sm:$0xff] %v451
  %516 = vst [vmem:[%s4 + $0x158] sm:$0xff] %v452
  %517 = vst [vmem:[%s4 + $0x160] sm:$0xff] %v453
  %518 = vst [vmem:[%s4 + $0x168] sm:$0xff] %v454
  %519 = vst [vmem:[%s4 + $0x170] sm:$0xff] %v455
  %520 = vst [vmem:[%s4 + $0x178] sm:$0xff] %v456
  %521 = vst [vmem:[%s4 + $0x180] sm:$0xff] %v457
  %522 = vst [vmem:[%s4 + $0x188] sm:$0xff] %v458
  %523 = vst [vmem:[%s4 + $0x190] sm:$0xff] %v459
  %524 = vst [vmem:[%s4 + $0x198] sm:$0xff] %v460
  %525 = vst [vmem:[%s4 + $0x1a0] sm:$0xff] %v461
  %526 = vst [vmem:[%s4 + $0x1a8] sm:$0xff] %v462
  %527 = vst [vmem:[%s4 + $0x1b0] sm:$0xff] %v463
  %528 = vst [vmem:[%s4 + $0x1b8] sm:$0xff] %v464
  %529 = vst [vmem:[%s4 + $0x1c0] sm:$0xff] %v465
  %530 = vst [vmem:[%s4 + $0x1c8] sm:$0xff] %v466
  %531 = vst [vmem:[%s4 + $0x1d0] sm:$0xff] %v467
  %532 = vst [vmem:[%s4 + $0x1d8] sm:$0xff] %v468
  %533 = vst [vmem:[%s4 + $0x1e0] sm:$0xff] %v469
  %534 = vst [vmem:[%s4 + $0x1e8] sm:$0xff] %v470
  %535 = vst [vmem:[%s4 + $0x1f0] sm:$0xff] %v471
  %536 = vst [vmem:[%s4 + $0x1f8] sm:$0xff] %v472
  // Predicated region
  $region18: #{residual_block_forward.11} parent=0 // pred_check
    _
  $region19: #{residual_block_forward.11} parent=0 // pred_check_branch
    %538 = sbr.rel (0) target = $region21
  $region20: #{residual_block_forward.11} parent=0 // pred_region
    _
  $region21: #{residual_block_forward.11} parent=0 // pred_fallthru
    _
  // Predicated region
  $region22: #{residual_block_forward.11} parent=0 // pred_check
    _
  $region23: #{residual_block_forward.11} parent=0 // pred_check_branch
    %540 = sbr.rel (0) target = $region25
  $region24: #{residual_block_forward.11} parent=0 // pred_region
    _
  $region25: #{residual_block_forward.11} parent=0 // pred_fallthru
    _

// kernel: residual_block_forward.14
$region0: #{residual_block_forward.14}
  #allocation0 [shape = 'u32[]', space=smem, size = 0x4, offset = 0x4, fixed_abs, tag = 'smem constant byte address 0x4 - core index']
  #allocation1 [shape = 'u32[72,128]{1,0:T(1,128)}', space=vmem, size = 0x9000, scoped, tag = 'internal scratch']
  %s0 = inlined_call_operand.vmem [shape: bf16[128,128], index: 0, kind: input, shape index: {}]
  %s1 = inlined_call_operand.vmem [shape: bf16[128,128], index: 1, kind: input, shape index: {}]
  %s2 = inlined_call_operand.vmem [shape: bf16[128,128], index: 2, kind: output, shape index: {0}]
  %s3 = inlined_call_operand.vmem [shape: f32[1,128], index: 3, kind: output, shape index: {1}]
  %s4 = inlined_call_operand.vmem [shape: f32[1,128], index: 4, kind: output, shape index: {2}]
  %5 = xla_tuple %s2, %s3, %s4
  %s6 = sld [smem:[#allocation0]]
  $region38: #{residual_block_forward.14} parent=0
    _
  %s8 = ssub.s32 1, %s6
  %s9 = scalar_select 0, %s8, %s6
  // Predicated region
  $region2: #{residual_block_forward.14} parent=0 // pred_check
    _
  $region3: #{residual_block_forward.14} parent=0 // pred_check_branch
    %11 = sbr.rel (0) target = $region5
  $region4: #{residual_block_forward.14} parent=0 // pred_region
    _
  $region5: #{residual_block_forward.14} parent=0 // pred_fallthru
    _
  // Predicated region
  $region6: #{residual_block_forward.14} parent=0 // pred_check
    _
  $region7: #{residual_block_forward.14} parent=0 // pred_check_branch
    %13 = sbr.rel (0) target = $region9
  $region8: #{residual_block_forward.14} parent=0 // pred_region
    _
  $region9: #{residual_block_forward.14} parent=0 // pred_fallthru
    _
  %p14 = scmp.eq.s32.totalorder 0, 0
  // Predicated region
  $region10: #{residual_block_forward.14} parent=0 // pred_check
    %p15 = pneg %p14
  $region11: #{residual_block_forward.14} parent=0 // pred_check_branch
    %17 = sbr.rel (%p15) target = $region13
  $region12: #{residual_block_forward.14} parent=0 // pred_region
    %18 = vst [vmem:[%s3] sm:$0x1] 0.0
    %19 = vst [vmem:[%s4] sm:$0x1] 0.0
  $region13: #{residual_block_forward.14} parent=0 // pred_fallthru
    _
  %v20 = vld [vmem:[%s0] sm:$0xf]
  %v21 = vld [vmem:[%s0 + $0x4] sm:$0xf]
  %v22 = vld [vmem:[%s0 + $0x8] sm:$0xf]
  %v23 = vld [vmem:[%s0 + $0xc] sm:$0xf]
  %v24 = vld [vmem:[%s0 + $0x10] sm:$0xf]
  %v25 = vld [vmem:[%s0 + $0x14] sm:$0xf]
  %v26 = vld [vmem:[%s0 + $0x18] sm:$0xf]
  %v27 = vld [vmem:[%s0 + $0x1c] sm:$0xf]
  %v28 = vld [vmem:[%s0 + $0x20] sm:$0xf]
  %v29 = vld [vmem:[%s0 + $0x24] sm:$0xf]
  %v30 = vld [vmem:[%s0 + $0x28] sm:$0xf]
  %v31 = vld [vmem:[%s0 + $0x2c] sm:$0xf]
  %v32 = vld [vmem:[%s0 + $0x30] sm:$0xf]
  %v33 = vld [vmem:[%s0 + $0x34] sm:$0xf]
  %v34 = vld [vmem:[%s0 + $0x38] sm:$0xf]
  %v35 = vld [vmem:[%s0 + $0x3c] sm:$0xf]
  %v36 = vld [vmem:[%s1] sm:$0xf]
  %v37 = vld [vmem:[%s1 + $0x4] sm:$0xf]
  %v38 = vld [vmem:[%s1 + $0x8] sm:$0xf]
  %v39 = vld [vmem:[%s1 + $0xc] sm:$0xf]
  %v40 = vld [vmem:[%s1 + $0x10] sm:$0xf]
  %v41 = vld [vmem:[%s1 + $0x14] sm:$0xf]
  %v42 = vld [vmem:[%s1 + $0x18] sm:$0xf]
  %v43 = vld [vmem:[%s1 + $0x1c] sm:$0xf]
  %v44 = vld [vmem:[%s1 + $0x20] sm:$0xf]
  %v45 = vld [vmem:[%s1 + $0x24] sm:$0xf]
  %v46 = vld [vmem:[%s1 + $0x28] sm:$0xf]
  %v47 = vld [vmem:[%s1 + $0x2c] sm:$0xf]
  %v48 = vld [vmem:[%s1 + $0x30] sm:$0xf]
  %v49 = vld [vmem:[%s1 + $0x34] sm:$0xf]
  %v50 = vld [vmem:[%s1 + $0x38] sm:$0xf]
  %v51 = vld [vmem:[%s1 + $0x3c] sm:$0xf]
  %v68 = vunpack.c.l.b16 %v20
  %v69 = vunpack.c.l.b16 %v21
  %v70 = vunpack.c.l.b16 %v22
  %v71 = vunpack.c.l.b16 %v23
  %v72 = vunpack.c.l.b16 %v24
  %v73 = vunpack.c.l.b16 %v25
  %v74 = vunpack.c.l.b16 %v26
  %v75 = vunpack.c.l.b16 %v27
  %v76 = vunpack.c.l.b16 %v28
  %v77 = vunpack.c.l.b16 %v29
  %v78 = vunpack.c.l.b16 %v30
  %v79 = vunpack.c.l.b16 %v31
  %v80 = vunpack.c.l.b16 %v32
  %v81 = vunpack.c.l.b16 %v33
  %v82 = vunpack.c.l.b16 %v34
  %v83 = vunpack.c.l.b16 %v35
  %v84 = vpack.c.b16 %v69, %v68
  %v85 = vpack.c.b16 %v71, %v70
  %v86 = vpack.c.b16 %v73, %v72
  %v87 = vpack.c.b16 %v75, %v74
  %v88 = vpack.c.b16 %v77, %v76
  %v89 = vpack.c.b16 %v79, %v78
  %v90 = vpack.c.b16 %v81, %v80
  %v91 = vpack.c.b16 %v83, %v82
  %v116 = vunpack.c.l.b16 %v36
  %v117 = vunpack.c.l.b16 %v37
  %v118 = vunpack.c.l.b16 %v38
  %v119 = vunpack.c.l.b16 %v39
  %v120 = vunpack.c.l.b16 %v40
  %v121 = vunpack.c.l.b16 %v41
  %v122 = vunpack.c.l.b16 %v42
  %v123 = vunpack.c.l.b16 %v43
  %v124 = vunpack.c.l.b16 %v44
  %v125 = vunpack.c.l.b16 %v45
  %v126 = vunpack.c.l.b16 %v46
  %v127 = vunpack.c.l.b16 %v47
  %v128 = vunpack.c.l.b16 %v48
  %v129 = vunpack.c.l.b16 %v49
  %v130 = vunpack.c.l.b16 %v50
  %v131 = vunpack.c.l.b16 %v51
  %v132 = vpack.c.b16 %v117, %v116
  %v133 = vpack.c.b16 %v119, %v118
  %v134 = vpack.c.b16 %v121, %v120
  %v135 = vpack.c.b16 %v123, %v122
  %v136 = vpack.c.b16 %v125, %v124
  %v137 = vpack.c.b16 %v127, %v126
  %v138 = vpack.c.b16 %v129, %v128
  %v139 = vpack.c.b16 %v131, %v130
  %148 = vmatpush.bf16.msra.mxu0 %v139
  %149 = vmatpush.bf16.msra.mxu0 %v138
  %150 = vmatpush.bf16.msra.mxu0 %v137
  %151 = vmatpush.bf16.msra.mxu0 %v136
  %152 = vmatpush.bf16.msra.mxu0 %v135
  %153 = vmatpush.bf16.msra.mxu0 %v134
  %154 = vmatpush.bf16.msra.mxu0 %v133
  %155 = vmatpush.bf16.msra.mxu0 %v132
  %156 = vmatmul.bf16.gmra.mxu0 %v84
  %v157 = vpop.f32.mrf.mxu0
  %v158 = vadd.f32 0.0, %v157
  %v159 = vpop.f32.mrf.mxu0
  %v160 = vadd.f32 0.0, %v159
  %161 = vmatmul.bf16.gmra.mxu0 %v85
  %v162 = vpop.f32.mrf.mxu0
  %v163 = vadd.f32 0.0, %v162
  %v164 = vpop.f32.mrf.mxu0
  %v165 = vadd.f32 0.0, %v164
  %166 = vmatmul.bf16.gmra.mxu0 %v86
  %v167 = vpop.f32.mrf.mxu0
  %v168 = vadd.f32 0.0, %v167
  %v169 = vpop.f32.mrf.mxu0
  %v170 = vadd.f32 0.0, %v169
  %171 = vmatmul.bf16.gmra.mxu0 %v87
  %v172 = vpop.f32.mrf.mxu0
  %v173 = vadd.f32 0.0, %v172
  %v174 = vpop.f32.mrf.mxu0
  %v175 = vadd.f32 0.0, %v174
  %176 = vmatmul.bf16.gmra.mxu0 %v88
  %v177 = vpop.f32.mrf.mxu0
  %v178 = vadd.f32 0.0, %v177
  %v179 = vpop.f32.mrf.mxu0
  %v180 = vadd.f32 0.0, %v179
  %181 = vmatmul.bf16.gmra.mxu0 %v89
  %v182 = vpop.f32.mrf.mxu0
  %v183 = vadd.f32 0.0, %v182
  %v184 = vpop.f32.mrf.mxu0
  %v185 = vadd.f32 0.0, %v184
  %186 = vmatmul.bf16.gmra.mxu0 %v90
  %v187 = vpop.f32.mrf.mxu0
  %v188 = vadd.f32 0.0, %v187
  %v189 = vpop.f32.mrf.mxu0
  %v190 = vadd.f32 0.0, %v189
  %191 = vmatmul.bf16.gmra.mxu0 %v91
  %v192 = vpop.f32.mrf.mxu0
  %v193 = vadd.f32 0.0, %v192
  %v194 = vpop.f32.mrf.mxu0
  %v195 = vadd.f32 0.0, %v194
  %196 = vdwg.mxu0
  %v197 = vpack.c.bf16 %v158, %v158
  %v198 = vpack.c.bf16 %v160, %v160
  %v199 = vpack.c.bf16 %v163, %v163
  %v200 = vpack.c.bf16 %v165, %v165
  %v201 = vpack.c.bf16 %v168, %v168
  %v202 = vpack.c.bf16 %v170, %v170
  %v203 = vpack.c.bf16 %v173, %v173
  %v204 = vpack.c.bf16 %v175, %v175
  %v205 = vpack.c.bf16 %v178, %v178
  %v206 = vpack.c.bf16 %v180, %v180
  %v207 = vpack.c.bf16 %v183, %v183
  %v208 = vpack.c.bf16 %v185, %v185
  %v209 = vpack.c.bf16 %v188, %v188
  %v210 = vpack.c.bf16 %v190, %v190
  %v211 = vpack.c.bf16 %v193, %v193
  %v212 = vpack.c.bf16 %v195, %v195
  %213 = vst [vmem:[%s2] sm:$0xf] %v197
  %214 = vst [vmem:[%s2 + $0x4] sm:$0xf] %v198
  %215 = vst [vmem:[%s2 + $0x8] sm:$0xf] %v199
  %216 = vst [vmem:[%s2 + $0xc] sm:$0xf] %v200
  %217 = vst [vmem:[%s2 + $0x10] sm:$0xf] %v201
  %218 = vst [vmem:[%s2 + $0x14] sm:$0xf] %v202
  %219 = vst [vmem:[%s2 + $0x18] sm:$0xf] %v203
  %220 = vst [vmem:[%s2 + $0x1c] sm:$0xf] %v204
  %221 = vst [vmem:[%s2 + $0x20] sm:$0xf] %v205
  %222 = vst [vmem:[%s2 + $0x24] sm:$0xf] %v206
  %223 = vst [vmem:[%s2 + $0x28] sm:$0xf] %v207
  %224 = vst [vmem:[%s2 + $0x2c] sm:$0xf] %v208
  %225 = vst [vmem:[%s2 + $0x30] sm:$0xf] %v209
  %226 = vst [vmem:[%s2 + $0x34] sm:$0xf] %v210
  %227 = vst [vmem:[%s2 + $0x38] sm:$0xf] %v211
  %228 = vst [vmem:[%s2 + $0x3c] sm:$0xf] %v212
  %v229 = vunpack.c.l.bf16 %v197
  %v230 = vunpack.c.l.bf16 %v198
  %v231 = vunpack.c.l.bf16 %v199
  %v232 = vunpack.c.l.bf16 %v200
  %v233 = vunpack.c.l.bf16 %v201
  %v234 = vunpack.c.l.bf16 %v202
  %v235 = vunpack.c.l.bf16 %v203
  %v236 = vunpack.c.l.bf16 %v204
  %v237 = vunpack.c.l.bf16 %v205
  %v238 = vunpack.c.l.bf16 %v206
  %v239 = vunpack.c.l.bf16 %v207
  %v240 = vunpack.c.l.bf16 %v208
  %v241 = vunpack.c.l.bf16 %v209
  %v242 = vunpack.c.l.bf16 %v210
  %v243 = vunpack.c.l.bf16 %v211
  %v244 = vunpack.c.l.bf16 %v212
  %v245 = vld [vmem:[%s3] sm:$0x1]
  %v246 = vadd.f32 %v229, %v230
  %v247 = vadd.f32 %v246, %v231
  %v248 = vadd.f32 %v247, %v232
  %v249 = vadd.f32 %v248, %v233
  %v250 = vadd.f32 %v249, %v234
  %v251 = vadd.f32 %v250, %v235
  %v252 = vadd.f32 %v251, %v236
  %v253 = vadd.f32 %v252, %v237
  %v254 = vadd.f32 %v253, %v238
  %v255 = vadd.f32 %v254, %v239
  %v256 = vadd.f32 %v255, %v240
  %v257 = vadd.f32 %v256, %v241
  %v258 = vadd.f32 %v257, %v242
  %v259 = vadd.f32 %v258, %v243
  %v260 = vadd.f32 %v259, %v244
  %v261 = vrot.slane %v260, 4
  %v262 = vadd.f32 %v260, %v261
  %v263 = vrot.slane %v262, 2
  %v264 = vadd.f32 %v262, %v263
  %v265 = vrot.slane %v264, 1
  %v266 = vadd.f32 %v264, %v265
  %v267 = vadd.f32 %v245, %v266
  %268 = vst [vmem:[%s3] sm:$0x1] %v267
  %v269 = vld [vmem:[%s4] sm:$0x1]
  %v270 = vmul.f32 %v229, %v229
  %v271 = vmul.f32 %v230, %v230
  %v272 = vmul.f32 %v231, %v231
  %v273 = vmul.f32 %v232, %v232
  %v274 = vmul.f32 %v233, %v233
  %v275 = vmul.f32 %v234, %v234
  %v276 = vmul.f32 %v235, %v235
  %v277 = vmul.f32 %v236, %v236
  %v278 = vmul.f32 %v237, %v237
  %v279 = vmul.f32 %v238, %v238
  %v280 = vmul.f32 %v239, %v239
  %v281 = vmul.f32 %v240, %v240
  %v282 = vmul.f32 %v241, %v241
  %v283 = vmul.f32 %v242, %v242
  %v284 = vmul.f32 %v243, %v243
  %v285 = vmul.f32 %v244, %v244
  %v286 = vadd.f32 %v270, %v271
  %v287 = vadd.f32 %v286, %v272
  %v288 = vadd.f32 %v287, %v273
  %v289 = vadd.f32 %v288, %v274
  %v290 = vadd.f32 %v289, %v275
  %v291 = vadd.f32 %v290, %v276
  %v292 = vadd.f32 %v291, %v277
  %v293 = vadd.f32 %v292, %v278
  %v294 = vadd.f32 %v293, %v279
  %v295 = vadd.f32 %v294, %v280
  %v296 = vadd.f32 %v295, %v281
  %v297 = vadd.f32 %v296, %v282
  %v298 = vadd.f32 %v297, %v283
  %v299 = vadd.f32 %v298, %v284
  %v300 = vadd.f32 %v299, %v285
  %v301 = vrot.slane %v300, 4
  %v302 = vadd.f32 %v300, %v301
  %v303 = vrot.slane %v302, 2
  %v304 = vadd.f32 %v302, %v303
  %v305 = vrot.slane %v304, 1
  %v306 = vadd.f32 %v304, %v305
  %v307 = vadd.f32 %v269, %v306
  %308 = vst [vmem:[%s4] sm:$0x1] %v307
  // Predicated region
  $region14: #{residual_block_forward.14} parent=0 // pred_check
    _
  $region15: #{residual_block_forward.14} parent=0 // pred_check_branch
    %310 = sbr.rel (0) target = $region17
  $region16: #{residual_block_forward.14} parent=0 // pred_region
    _
  $region17: #{residual_block_forward.14} parent=0 // pred_fallthru
    _
  // Predicated region
  $region18: #{residual_block_forward.14} parent=0 // pred_check
    _
  $region19: #{residual_block_forward.14} parent=0 // pred_check_branch
    %312 = sbr.rel (0) target = $region21
  $region20: #{residual_block_forward.14} parent=0 // pred_region
    _
  $region21: #{residual_block_forward.14} parent=0 // pred_fallthru
    _
  // Predicated region
  $region22: #{residual_block_forward.14} parent=0 // pred_check
    _
  $region23: #{residual_block_forward.14} parent=0 // pred_check_branch
    %314 = sbr.rel (0) target = $region25
  $region24: #{residual_block_forward.14} parent=0 // pred_region
    _
  $region25: #{residual_block_forward.14} parent=0 // pred_fallthru
    _
  // Predicated region
  $region26: #{residual_block_forward.14} parent=0 // pred_check
    _
  $region27: #{residual_block_forward.14} parent=0 // pred_check_branch
    %316 = sbr.rel (0) target = $region29
  $region28: #{residual_block_forward.14} parent=0 // pred_region
    _
  $region29: #{residual_block_forward.14} parent=0 // pred_fallthru
    _
  // Predicated region
  $region30: #{residual_block_forward.14} parent=0 // pred_check
    _
  $region31: #{residual_block_forward.14} parent=0 // pred_check_branch
    %318 = sbr.rel (0) target = $region33
  $region32: #{residual_block_forward.14} parent=0 // pred_region
    _
  $region33: #{residual_block_forward.14} parent=0 // pred_fallthru
    _
  // Predicated region
  $region34: #{residual_block_forward.14} parent=0 // pred_check
    _
  $region35: #{residual_block_forward.14} parent=0 // pred_check_branch
    %320 = sbr.rel (0) target = $region37
  $region36: #{residual_block_forward.14} parent=0 // pred_region
    _
  $region37: #{residual_block_forward.14} parent=0 // pred_fallthru
    _

// kernel: residual_block_forward.15
$region0: #{residual_block_forward.15}
  #allocation0 [shape = 'u32[]', space=smem, size = 0x4, offset = 0x4, fixed_abs, tag = 'smem constant byte address 0x4 - core index']
  #allocation1 [shape = 'u32[72,128]{1,0:T(1,128)}', space=vmem, size = 0x9000, scoped, tag = 'internal scratch']
  %s0 = inlined_call_operand.vmem [shape: bf16[128,128], index: 0, kind: input, shape index: {}]
  %s1 = inlined_call_operand.vmem [shape: f32[1,128], index: 1, kind: input, shape index: {}]
  %s2 = inlined_call_operand.vmem [shape: f32[1,128], index: 2, kind: input, shape index: {}]
  %s3 = inlined_call_operand.vmem [shape: f32[128,128], index: 3, kind: input, shape index: {}]
  %s4 = inlined_call_operand.vmem [shape: f32[128,128], index: 4, kind: output, shape index: {}]
  %s5 = sld [smem:[#allocation0]]
  $region26: #{residual_block_forward.15} parent=0
    _
  %s7 = ssub.s32 1, %s5
  %s8 = scalar_select 0, %s7, %s5
  // Predicated region
  $region2: #{residual_block_forward.15} parent=0 // pred_check
    _
  $region3: #{residual_block_forward.15} parent=0 // pred_check_branch
    %10 = sbr.rel (0) target = $region5
  $region4: #{residual_block_forward.15} parent=0 // pred_region
    _
  $region5: #{residual_block_forward.15} parent=0 // pred_fallthru
    _
  // Predicated region
  $region6: #{residual_block_forward.15} parent=0 // pred_check
    _
  $region7: #{residual_block_forward.15} parent=0 // pred_check_branch
    %12 = sbr.rel (0) target = $region9
  $region8: #{residual_block_forward.15} parent=0 // pred_region
    _
  $region9: #{residual_block_forward.15} parent=0 // pred_fallthru
    _
  // Predicated region
  $region10: #{residual_block_forward.15} parent=0 // pred_check
    _
  $region11: #{residual_block_forward.15} parent=0 // pred_check_branch
    %14 = sbr.rel (0) target = $region13
  $region12: #{residual_block_forward.15} parent=0 // pred_region
    _
  $region13: #{residual_block_forward.15} parent=0 // pred_fallthru
    _
  // Predicated region
  $region14: #{residual_block_forward.15} parent=0 // pred_check
    _
  $region15: #{residual_block_forward.15} parent=0 // pred_check_branch
    %16 = sbr.rel (0) target = $region17
  $region16: #{residual_block_forward.15} parent=0 // pred_region
    _
  $region17: #{residual_block_forward.15} parent=0 // pred_fallthru
    _
  %v17 = vld [vmem:[%s0] sm:$0xf]
  %v18 = vld [vmem:[%s0 + $0x4] sm:$0xf]
  %v19 = vld [vmem:[%s0 + $0x8] sm:$0xf]
  %v20 = vld [vmem:[%s0 + $0xc] sm:$0xf]
  %v21 = vld [vmem:[%s0 + $0x10] sm:$0xf]
  %v22 = vld [vmem:[%s0 + $0x14] sm:$0xf]
  %v23 = vld [vmem:[%s0 + $0x18] sm:$0xf]
  %v24 = vld [vmem:[%s0 + $0x1c] sm:$0xf]
  %v25 = vld [vmem:[%s0 + $0x20] sm:$0xf]
  %v26 = vld [vmem:[%s0 + $0x24] sm:$0xf]
  %v27 = vld [vmem:[%s0 + $0x28] sm:$0xf]
  %v28 = vld [vmem:[%s0 + $0x2c] sm:$0xf]
  %v29 = vld [vmem:[%s0 + $0x30] sm:$0xf]
  %v30 = vld [vmem:[%s0 + $0x34] sm:$0xf]
  %v31 = vld [vmem:[%s0 + $0x38] sm:$0xf]
  %v32 = vld [vmem:[%s0 + $0x3c] sm:$0xf]
  %v33 = vunpack.c.l.bf16 %v17
  %v34 = vunpack.c.l.bf16 %v18
  %v35 = vunpack.c.l.bf16 %v19
  %v36 = vunpack.c.l.bf16 %v20
  %v37 = vunpack.c.l.bf16 %v21
  %v38 = vunpack.c.l.bf16 %v22
  %v39 = vunpack.c.l.bf16 %v23
  %v40 = vunpack.c.l.bf16 %v24
  %v41 = vunpack.c.l.bf16 %v25
  %v42 = vunpack.c.l.bf16 %v26
  %v43 = vunpack.c.l.bf16 %v27
  %v44 = vunpack.c.l.bf16 %v28
  %v45 = vunpack.c.l.bf16 %v29
  %v46 = vunpack.c.l.bf16 %v30
  %v47 = vunpack.c.l.bf16 %v31
  %v48 = vunpack.c.l.bf16 %v32
  %v49 = vld [vmem:[%s1] sm:$0x1]
  %v51 = vperm.slane %v49, 0
  %v53 = vmul.f32 %v33, %v51
  %v54 = vmul.f32 %v34, %v51
  %v55 = vmul.f32 %v35, %v51
  %v56 = vmul.f32 %v36, %v51
  %v57 = vmul.f32 %v37, %v51
  %v58 = vmul.f32 %v38, %v51
  %v59 = vmul.f32 %v39, %v51
  %v60 = vmul.f32 %v40, %v51
  %v61 = vmul.f32 %v41, %v51
  %v62 = vmul.f32 %v42, %v51
  %v63 = vmul.f32 %v43, %v51
  %v64 = vmul.f32 %v44, %v51
  %v65 = vmul.f32 %v45, %v51
  %v66 = vmul.f32 %v46, %v51
  %v67 = vmul.f32 %v47, %v51
  %v68 = vmul.f32 %v48, %v51
  %v69 = vld [vmem:[%s2] sm:$0x1]
  %v71 = vperm.slane %v69, 0
  %v73 = vadd.f32 %v53, %v71
  %v74 = vadd.f32 %v54, %v71
  %v75 = vadd.f32 %v55, %v71
  %v76 = vadd.f32 %v56, %v71
  %v77 = vadd.f32 %v57, %v71
  %v78 = vadd.f32 %v58, %v71
  %v79 = vadd.f32 %v59, %v71
  %v80 = vadd.f32 %v60, %v71
  %v81 = vadd.f32 %v61, %v71
  %v82 = vadd.f32 %v62, %v71
  %v83 = vadd.f32 %v63, %v71
  %v84 = vadd.f32 %v64, %v71
  %v85 = vadd.f32 %v65, %v71
  %v86 = vadd.f32 %v66, %v71
  %v87 = vadd.f32 %v67, %v71
  %v88 = vadd.f32 %v68, %v71
  %v89 = vld [vmem:[%s3] sm:$0xff]
  %v90 = vld [vmem:[%s3 + $0x8] sm:$0xff]
  %v91 = vld [vmem:[%s3 + $0x10] sm:$0xff]
  %v92 = vld [vmem:[%s3 + $0x18] sm:$0xff]
  %v93 = vld [vmem:[%s3 + $0x20] sm:$0xff]
  %v94 = vld [vmem:[%s3 + $0x28] sm:$0xff]
  %v95 = vld [vmem:[%s3 + $0x30] sm:$0xff]
  %v96 = vld [vmem:[%s3 + $0x38] sm:$0xff]
  %v97 = vld [vmem:[%s3 + $0x40] sm:$0xff]
  %v98 = vld [vmem:[%s3 + $0x48] sm:$0xff]
  %v99 = vld [vmem:[%s3 + $0x50] sm:$0xff]
  %v100 = vld [vmem:[%s3 + $0x58] sm:$0xff]
  %v101 = vld [vmem:[%s3 + $0x60] sm:$0xff]
  %v102 = vld [vmem:[%s3 + $0x68] sm:$0xff]
  %v103 = vld [vmem:[%s3 + $0x70] sm:$0xff]
  %v104 = vld [vmem:[%s3 + $0x78] sm:$0xff]
  %v105 = vadd.f32 %v73, %v89
  %v106 = vadd.f32 %v74, %v90
  %v107 = vadd.f32 %v75, %v91
  %v108 = vadd.f32 %v76, %v92
  %v109 = vadd.f32 %v77, %v93
  %v110 = vadd.f32 %v78, %v94
  %v111 = vadd.f32 %v79, %v95
  %v112 = vadd.f32 %v80, %v96
  %v113 = vadd.f32 %v81, %v97
  %v114 = vadd.f32 %v82, %v98
  %v115 = vadd.f32 %v83, %v99
  %v116 = vadd.f32 %v84, %v100
  %v117 = vadd.f32 %v85, %v101
  %v118 = vadd.f32 %v86, %v102
  %v119 = vadd.f32 %v87, %v103
  %v120 = vadd.f32 %v88, %v104
  %v121 = vmax.f32 %v105, 0.0
  %v122 = vmax.f32 %v106, 0.0
  %v123 = vmax.f32 %v107, 0.0
  %v124 = vmax.f32 %v108, 0.0
  %v125 = vmax.f32 %v109, 0.0
  %v126 = vmax.f32 %v110, 0.0
  %v127 = vmax.f32 %v111, 0.0
  %v128 = vmax.f32 %v112, 0.0
  %v129 = vmax.f32 %v113, 0.0
  %v130 = vmax.f32 %v114, 0.0
  %v131 = vmax.f32 %v115, 0.0
  %v132 = vmax.f32 %v116, 0.0
  %v133 = vmax.f32 %v117, 0.0
  %v134 = vmax.f32 %v118, 0.0
  %v135 = vmax.f32 %v119, 0.0
  %v136 = vmax.f32 %v120, 0.0
  %137 = vst [vmem:[%s4] sm:$0xff] %v121
  %138 = vst [vmem:[%s4 + $0x8] sm:$0xff] %v122
  %139 = vst [vmem:[%s4 + $0x10] sm:$0xff] %v123
  %140 = vst [vmem:[%s4 + $0x18] sm:$0xff] %v124
  %141 = vst [vmem:[%s4 + $0x20] sm:$0xff] %v125
  %142 = vst [vmem:[%s4 + $0x28] sm:$0xff] %v126
  %143 = vst [vmem:[%s4 + $0x30] sm:$0xff] %v127
  %144 = vst [vmem:[%s4 + $0x38] sm:$0xff] %v128
  %145 = vst [vmem:[%s4 + $0x40] sm:$0xff] %v129
  %146 = vst [vmem:[%s4 + $0x48] sm:$0xff] %v130
  %147 = vst [vmem:[%s4 + $0x50] sm:$0xff] %v131
  %148 = vst [vmem:[%s4 + $0x58] sm:$0xff] %v132
  %149 = vst [vmem:[%s4 + $0x60] sm:$0xff] %v133
  %150 = vst [vmem:[%s4 + $0x68] sm:$0xff] %v134
  %151 = vst [vmem:[%s4 + $0x70] sm:$0xff] %v135
  %152 = vst [vmem:[%s4 + $0x78] sm:$0xff] %v136
  // Predicated region
  $region18: #{residual_block_forward.15} parent=0 // pred_check
    _
  $region19: #{residual_block_forward.15} parent=0 // pred_check_branch
    %154 = sbr.rel (0) target = $region21
  $region20: #{residual_block_forward.15} parent=0 // pred_region
    _
  $region21: #{residual_block_forward.15} parent=0 // pred_fallthru
    _
  // Predicated region
  $region22: #{residual_block_forward.15} parent=0 // pred_check
    _
  $region23: #{residual_block_forward.15} parent=0 // pred_check_branch
    %156 = sbr.rel (0) target = $region25
  $region24: #{residual_block_forward.15} parent=0 // pred_region
    _
  $region25: #{residual_block_forward.15} parent=0 // pred_fallthru
    _

</llo_original>
